<compile_context>
chip_gen: v5e
topology: v5e:2x2
jax: 0.10.0
libtpu: 0.0.40
codegen_flags: <defaults>
</compile_context>

<pallas_src>
import jax
import jax.numpy as jnp
from jax.experimental import pallas as pl
from jax.experimental.pallas import tpu as pltpu

LATENT = 32                 # dec_input feature dim (w4 is (LATENT, 280))
H1, H2, OUT = 280, 520, 28 * 28


def _round_up(n, m):
    return (n + m - 1) // m * m


def _pad2d(a, rows, cols):
    return jnp.pad(a, ((0, rows - a.shape[0]), (0, cols - a.shape[1])))


# Lane-padded *intermediate* widths (multiples of 128 -> lane-dense VMEM
# activations).  The final layer keeps its true width (784) so the HBM output
# store is un-padded.
H1P = _round_up(H1, 128)    # 384
H2P = _round_up(H2, 128)    # 640


def _decoder_kernel(x_ref, w4_ref, b4_ref, w5_ref, b5_ref, w6_ref, b6_ref, o_ref):
    # Three chained MXU matmuls fused with f32 bias-add + ReLU epilogues.
    # Intermediate activations never leave VMEM.
    x = x_ref[...]                                                      # (tb, 32)
    h1 = jnp.dot(x, w4_ref[...], preferred_element_type=jnp.float32) + b4_ref[...]
    x1 = jnp.maximum(h1.astype(w5_ref.dtype), 0)                        # (tb, 384)
    h2 = jnp.dot(x1, w5_ref[...], preferred_element_type=jnp.float32) + b5_ref[...]
    x2 = jnp.maximum(h2.astype(w6_ref.dtype), 0)                        # (tb, 640)
    h3 = jnp.dot(x2, w6_ref[...], preferred_element_type=jnp.float32) + b6_ref[...]
    o_ref[...] = jnp.maximum(h3, 0.0).astype(o_ref.dtype)               # (tb, 784)


def prepare_decoder_params(w4, b4, w5, b5, w6, b6, *, compute_dtype=jnp.bfloat16):
    """One-time padding/casting of the decoder parameters.

    Hoisted out of the per-call forward; cache the result and reuse it.
    Zero padding keeps the padded lanes exactly zero through bias-add(0)+ReLU,
    so results are unchanged.
    """
    w4p = _pad2d(jnp.asarray(w4, jnp.float32), LATENT, H1P).astype(compute_dtype)
    w5p = _pad2d(jnp.asarray(w5, jnp.float32), H1P, H2P).astype(compute_dtype)
    w6p = _pad2d(jnp.asarray(w6, jnp.float32), H2P, OUT).astype(compute_dtype)
    b4p = _pad2d(jnp.asarray(b4, jnp.float32).reshape(1, -1), 1, H1P)
    b5p = _pad2d(jnp.asarray(b5, jnp.float32).reshape(1, -1), 1, H2P)
    b6p = jnp.asarray(b6, jnp.float32).reshape(1, OUT)
    return (w4p, b4p, w5p, b5p, w6p, b6p)


def decoder_forward(dec_input, params, *, tile_b=512, out_dtype=jnp.float32):
    """dec_input: (B, ...) flattened to (B, LATENT). Returns (B, 1, 28, 28)."""
    w4p, b4p, w5p, b5p, w6p, b6p = params
    compute_dtype = w4p.dtype

    B = dec_input.shape[0]
    x = dec_input.reshape(B, -1)
    assert x.shape[1] == LATENT, x.shape

    # Batch padded only to a sublane multiple of 8 (NOT to a multiple of tb);
    # Pallas masks the ragged last grid block.
    Bp = _round_up(B, 8)
    xp = _pad2d(x.astype(jnp.float32), Bp, LATENT).astype(compute_dtype)

    tb = min(tile_b, Bp)
    if Bp // tb < 2:
        # Guarantee >=2 grid steps (when Bp > 8) so the "parallel" batch axis
        # can shard across both v7x TensorCores.
        tb = max(8, _round_up(pl.cdiv(Bp, 2), 8))
    grid = (pl.cdiv(Bp, tb),)
    rows = grid[0] * tb                      # rows actually processed

    cdt = jnp.dtype(compute_dtype).itemsize
    odt = jnp.dtype(out_dtype).itemsize
    OUTP = _round_up(OUT, 128)               # VMEM-internal lane footprint only

    # Explicit scoped-VMEM budget (default scoped limit is below what larger
    # batch tiles want); keep well under v7x's 64 MiB physical.
    vmem_est = (
        2 * (LATENT * H1P + H1P * H2P + H2P * OUTP) * cdt      # weights (dbl-buf)
        + 2 * (H1P + H2P + OUTP) * 4                            # biases
        + 2 * tb * 128 * cdt                                    # input dbl-buf
        + 2 * tb * OUTP * odt                                   # output dbl-buf
        + tb * (H1P + H2P + OUTP) * 4                           # f32 intermediates
    )
    vmem_limit = int(min(max(2 * vmem_est, 24 << 20), 48 << 20))

    cost = pl.CostEstimate(
        flops=2 * rows * (LATENT * H1P + H1P * H2P + H2P * OUT),
        transcendentals=0,
        bytes_accessed=int(
            (w4p.size + w5p.size + w6p.size) * cdt
            + (b4p.size + b5p.size + b6p.size) * 4
            + rows * LATENT * cdt
            + rows * OUT * odt),
    )

    out_padded = pl.pallas_call(
        _decoder_kernel,
        out_shape=jax.ShapeDtypeStruct((Bp, OUT), out_dtype),
        grid_spec=pltpu.PrefetchScalarGridSpec(
            num_scalar_prefetch=0,
            grid=grid,
            in_specs=[
                pl.BlockSpec((tb, LATENT), lambda i: (i, 0)),   # activation tile
                pl.BlockSpec((LATENT, H1P), lambda i: (0, 0)),  # resident weights
                pl.BlockSpec((1, H1P), lambda i: (0, 0)),
                pl.BlockSpec((H1P, H2P), lambda i: (0, 0)),
                pl.BlockSpec((1, H2P), lambda i: (0, 0)),
                pl.BlockSpec((H2P, OUT), lambda i: (0, 0)),     # true 784-wide output layer
                pl.BlockSpec((1, OUT), lambda i: (0, 0)),
            ],
            out_specs=pl.BlockSpec((tb, OUT), lambda i: (i, 0)),
        ),
        compiler_params=pltpu.CompilerParams(
            dimension_semantics=("parallel",),
            vmem_limit_bytes=vmem_limit),
        cost_estimate=cost,
    )(xp, w4p, b4p, w5p, b5p, w6p, b6p)

    # No lane slice needed anymore; row slice only when B is not a multiple of 8.
    out = out_padded if Bp == B else out_padded[:B]
    return out.reshape(B, 1, 28, 28)


def _reference(dec_input, w4, b4, w5, b5, w6, b6):
    x = dec_input.reshape(dec_input.shape[0], -1).astype(jnp.float32)
    x1 = jax.nn.relu(x @ w4 + b4)
    x2 = jax.nn.relu(x1 @ w5 + b5)
    x3 = jax.nn.relu(x2 @ w6 + b6)
    return x3.reshape(x.shape[0], 1, 28, 28)


if __name__ == "__main__":
    key = jax.random.PRNGKey(0)
    k_in, k4, k5, k6 = jax.random.split(key, 4)

    B = 2
    dec_input = jax.random.normal(k_in, (B, LATENT), dtype=jnp.float32)

    # Deterministic synthetic "shared weights" (shapes implied by the forward):
    #   w4: (32, 280), w5: (280, 520), w6: (520, 784)
    w4 = jax.random.normal(k4, (LATENT, H1), dtype=jnp.float32) * 0.05
    w5 = jax.random.normal(k5, (H1, H2), dtype=jnp.float32) * 0.05
    w6 = jax.random.normal(k6, (H2, OUT), dtype=jnp.float32) * 0.05
    # nn.Parameter(torch.zeros(...)) biases:
    b4 = jnp.zeros((H1,), dtype=jnp.float32)
    b5 = jnp.zeros((H2,), dtype=jnp.float32)
    b6 = jnp.zeros((OUT,), dtype=jnp.float32)

    ref = _reference(dec_input, w4, b4, w5, b5, w6, b6)

    # Exact-semantics f32 path (tight tolerance). Params prepared once, reused.
    params_f32 = prepare_decoder_params(w4, b4, w5, b5, w6, b6,
                                        compute_dtype=jnp.float32)
    out_f32 = decoder_forward(dec_input, params_f32)
    out_f32 = jax.block_until_ready(out_f32)
    assert out_f32.shape == (B, 1, 28, 28), out_f32.shape
    assert jnp.allclose(out_f32, ref, atol=1e-4, rtol=1e-4), "f32 mismatch vs reference"

    # Fast path: bf16 weights/matmul inputs, f32 accumulation/epilogue, f32 output.
    params_bf16 = prepare_decoder_params(w4, b4, w5, b5, w6, b6,
                                         compute_dtype=jnp.bfloat16)
    out_bf16 = decoder_forward(dec_input, params_bf16)
    out_bf16 = jax.block_until_ready(out_bf16)
    assert out_bf16.shape == (B, 1, 28, 28), out_bf16.shape
    assert jnp.allclose(out_bf16, ref, atol=2e-2, rtol=2e-2), "bf16 mismatch vs reference"

    print("KERNEL_OK")
</pallas_src>

<mosaic_0001>
module attributes {stable_mosaic.version = 11 : i64} {
  func.func @_decoder_kernel(%arg0: i32, %arg1: memref<8x32xf32, #tpu.memory_space<vmem>>, %arg2: memref<32x384xf32, #tpu.memory_space<vmem>>, %arg3: memref<1x384xf32, #tpu.memory_space<vmem>>, %arg4: memref<384x640xf32, #tpu.memory_space<vmem>>, %arg5: memref<1x640xf32, #tpu.memory_space<vmem>>, %arg6: memref<640x784xf32, #tpu.memory_space<vmem>>, %arg7: memref<1x784xf32, #tpu.memory_space<vmem>>, %arg8: memref<8x784xf32, #tpu.memory_space<vmem>>) attributes {dimension_semantics = [#tpu.dimension_semantics<parallel>], iteration_bounds = array<i64: 1>, scalar_prefetch = 0 : i64, scratch_operands = 0 : i64, tpu.core_type = #tpu.core_type<tc>, window_params = [{transform_indices = @transform_0, window_bounds = array<i64: 8, 32>}, {pipeline_mode = #tpu.pipeline_mode<synchronous>, transform_indices = @transform_1, window_bounds = array<i64: 32, 384>}, {pipeline_mode = #tpu.pipeline_mode<synchronous>, transform_indices = @transform_2, window_bounds = array<i64: 1, 384>}, {pipeline_mode = #tpu.pipeline_mode<synchronous>, transform_indices = @transform_3, window_bounds = array<i64: 384, 640>}, {pipeline_mode = #tpu.pipeline_mode<synchronous>, transform_indices = @transform_4, window_bounds = array<i64: 1, 640>}, {pipeline_mode = #tpu.pipeline_mode<synchronous>, transform_indices = @transform_5, window_bounds = array<i64: 640, 784>}, {pipeline_mode = #tpu.pipeline_mode<synchronous>, transform_indices = @transform_6, window_bounds = array<i64: 1, 784>}, {transform_indices = @transform_7, window_bounds = array<i64: 8, 784>}]} {
    %c0 = arith.constant 0 : index
    %c0_0 = arith.constant 0 : index
    %0 = vector.load %arg1[%c0, %c0_0] : memref<8x32xf32, #tpu.memory_space<vmem>>, vector<8x32xf32>
    %c0_1 = arith.constant 0 : index
    %c0_2 = arith.constant 0 : index
    %1 = vector.load %arg2[%c0_1, %c0_2] : memref<32x384xf32, #tpu.memory_space<vmem>>, vector<32x384xf32>
    %cst = arith.constant dense<0.000000e+00> : vector<8x384xf32>
    %2 = tpu.matmul %0, %1, %cst {dimension_numbers = #tpu.dot_dimension_numbers<[1], [0], [0], [1], [0, 0, 1, 1], [], []>} : vector<8x32xf32>, vector<32x384xf32>, vector<8x384xf32> -> vector<8x384xf32>
    %c0_3 = arith.constant 0 : index
    %c0_4 = arith.constant 0 : index
    %3 = vector.load %arg3[%c0_3, %c0_4] : memref<1x384xf32, #tpu.memory_space<vmem>>, vector<1x384xf32>
    %4 = vector.broadcast %3 : vector<1x384xf32> to vector<8x384xf32>
    %5 = arith.addf %2, %4 : vector<8x384xf32>
    %cst_5 = arith.constant 0.000000e+00 : f32
    %6 = vector.broadcast %cst_5 : f32 to vector<8x384xf32>
    %7 = arith.maximumf %5, %6 : vector<8x384xf32>
    %c0_6 = arith.constant 0 : index
    %c0_7 = arith.constant 0 : index
    %8 = vector.load %arg4[%c0_6, %c0_7] : memref<384x640xf32, #tpu.memory_space<vmem>>, vector<384x640xf32>
    %cst_8 = arith.constant dense<0.000000e+00> : vector<8x640xf32>
    %9 = tpu.matmul %7, %8, %cst_8 {dimension_numbers = #tpu.dot_dimension_numbers<[1], [0], [0], [1], [0, 0, 1, 1], [], []>} : vector<8x384xf32>, vector<384x640xf32>, vector<8x640xf32> -> vector<8x640xf32>
    %c0_9 = arith.constant 0 : index
    %c0_10 = arith.constant 0 : index
    %10 = vector.load %arg5[%c0_9, %c0_10] : memref<1x640xf32, #tpu.memory_space<vmem>>, vector<1x640xf32>
    %11 = vector.broadcast %10 : vector<1x640xf32> to vector<8x640xf32>
    %12 = arith.addf %9, %11 : vector<8x640xf32>
    %cst_11 = arith.constant 0.000000e+00 : f32
    %13 = vector.broadcast %cst_11 : f32 to vector<8x640xf32>
    %14 = arith.maximumf %12, %13 : vector<8x640xf32>
    %c0_12 = arith.constant 0 : index
    %c0_13 = arith.constant 0 : index
    %15 = vector.load %arg6[%c0_12, %c0_13] : memref<640x784xf32, #tpu.memory_space<vmem>>, vector<640x784xf32>
    %cst_14 = arith.constant dense<0.000000e+00> : vector<8x784xf32>
    %16 = tpu.matmul %14, %15, %cst_14 {dimension_numbers = #tpu.dot_dimension_numbers<[1], [0], [0], [1], [0, 0, 1, 1], [], []>} : vector<8x640xf32>, vector<640x784xf32>, vector<8x784xf32> -> vector<8x784xf32>
    %c0_15 = arith.constant 0 : index
    %c0_16 = arith.constant 0 : index
    %17 = vector.load %arg7[%c0_15, %c0_16] : memref<1x784xf32, #tpu.memory_space<vmem>>, vector<1x784xf32>
    %18 = vector.broadcast %17 : vector<1x784xf32> to vector<8x784xf32>
    %19 = arith.addf %16, %18 : vector<8x784xf32>
    %cst_17 = arith.constant 0.000000e+00 : f32
    %20 = vector.broadcast %cst_17 : f32 to vector<8x784xf32>
    %21 = arith.maximumf %19, %20 : vector<8x784xf32>
    %c0_18 = arith.constant 0 : index
    %c0_19 = arith.constant 0 : index
    %22 = vector.load %arg8[%c0_18, %c0_19] : memref<8x784xf32, #tpu.memory_space<vmem>>, vector<8x784xf32>
    tpu.vector_store %arg8[%c0_18, %c0_19], %21 {strides = array<i32>} : memref<8x784xf32, #tpu.memory_space<vmem>>, vector<8x784xf32>,
    return
  }
  func.func @transform_0(%arg0: i32) -> (i32, i32) {
    %c0_i32 = arith.constant 0 : i32
    %c0_i32_0 = arith.constant 0 : i32
    return %arg0, %c0_i32 : i32, i32
  }
  func.func @transform_1(%arg0: i32) -> (i32, i32) {
    %c0_i32 = arith.constant 0 : i32
    %c0_i32_0 = arith.constant 0 : i32
    %c0_i32_1 = arith.constant 0 : i32
    return %c0_i32, %c0_i32_0 : i32, i32
  }
  func.func @transform_2(%arg0: i32) -> (i32, i32) {
    %c0_i32 = arith.constant 0 : i32
    %c0_i32_0 = arith.constant 0 : i32
    %c0_i32_1 = arith.constant 0 : i32
    return %c0_i32, %c0_i32_0 : i32, i32
  }
  func.func @transform_3(%arg0: i32) -> (i32, i32) {
    %c0_i32 = arith.constant 0 : i32
    %c0_i32_0 = arith.constant 0 : i32
    %c0_i32_1 = arith.constant 0 : i32
    return %c0_i32, %c0_i32_0 : i32, i32
  }
  func.func @transform_4(%arg0: i32) -> (i32, i32) {
    %c0_i32 = arith.constant 0 : i32
    %c0_i32_0 = arith.constant 0 : i32
    %c0_i32_1 = arith.constant 0 : i32
    return %c0_i32, %c0_i32_0 : i32, i32
  }
  func.func @transform_5(%arg0: i32) -> (i32, i32) {
    %c0_i32 = arith.constant 0 : i32
    %c0_i32_0 = arith.constant 0 : i32
    %c0_i32_1 = arith.constant 0 : i32
    return %c0_i32, %c0_i32_0 : i32, i32
  }
  func.func @transform_6(%arg0: i32) -> (i32, i32) {
    %c0_i32 = arith.constant 0 : i32
    %c0_i32_0 = arith.constant 0 : i32
    %c0_i32_1 = arith.constant 0 : i32
    return %c0_i32, %c0_i32_0 : i32, i32
  }
  func.func @transform_7(%arg0: i32) -> (i32, i32) {
    %c0_i32 = arith.constant 0 : i32
    %c0_i32_0 = arith.constant 0 : i32
    return %arg0, %c0_i32 : i32, i32
  }
}

</mosaic_0001>

<llo_original>
// kernel: tpu_custom_call.1
$region0: #{tpu_custom_call.1}
  #allocation0 [shape = 'u32[]', space=smem, size = 0x4, offset = 0x4, fixed_abs, tag = 'smem constant byte address 0x4 - core index']
  #allocation1 [shape = 'u32[72,128]{1,0:T(1,128)}', space=vmem, size = 0x9000, scoped, tag = 'internal scratch']
  %s0 = inlined_call_operand.vmem [shape: f32[8,32], index: 0, kind: input, shape index: {}]
  %s1 = inlined_call_operand.vmem [shape: f32[32,384], index: 1, kind: input, shape index: {}]
  %s2 = inlined_call_operand.vmem [shape: f32[1,384], index: 2, kind: input, shape index: {}]
  %s3 = inlined_call_operand.vmem [shape: f32[384,640], index: 3, kind: input, shape index: {}]
  %s4 = inlined_call_operand.vmem [shape: f32[1,640], index: 4, kind: input, shape index: {}]
  %s5 = inlined_call_operand.vmem [shape: f32[640,784], index: 5, kind: input, shape index: {}]
  %s6 = inlined_call_operand.vmem [shape: f32[1,784], index: 6, kind: input, shape index: {}]
  %s7 = inlined_call_operand.hbm [shape: f32[8,784], index: 7, kind: output, shape index: {}]
  %s8 = sld [smem:[#allocation0]]
  $region38: #{tpu_custom_call.1} parent=0
    _
  %s10 = ssub.s32 1, %s8
  %s11 = scalar_select 0, %s10, %s8
  $region1: #{tpu_custom_call.1} parent=0
    #allocation2 [shape = 'u8[28672]{0}', space=vmem, size = 0x7000, scoped, tag = 'output window, operand 0, single buffered']
    #allocation3 [shape = 's32[1]{0}', space=sflag, size = 0x4, scoped, tag = 'scoped memory for tpu_custom_call.1']
    %12 = vsyncpa [#allocation3], 0
    // Predicated region
    $region2: #{tpu_custom_call.1} parent=1 // pred_check
      _
    $region3: #{tpu_custom_call.1} parent=1 // pred_check_branch
      %14 = sbr.rel (0) target = $region5
    $region4: #{tpu_custom_call.1} parent=1 // pred_region
      _
    $region5: #{tpu_custom_call.1} parent=1 // pred_fallthru
      _
    // Predicated region
    $region6: #{tpu_custom_call.1} parent=1 // pred_check
      _
    $region7: #{tpu_custom_call.1} parent=1 // pred_check_branch
      %16 = sbr.rel (0) target = $region9
    $region8: #{tpu_custom_call.1} parent=1 // pred_region
      _
    $region9: #{tpu_custom_call.1} parent=1 // pred_fallthru
      _
    // Predicated region
    $region10: #{tpu_custom_call.1} parent=1 // pred_check
      _
    $region11: #{tpu_custom_call.1} parent=1 // pred_check_branch
      %18 = sbr.rel (0) target = $region13
    $region12: #{tpu_custom_call.1} parent=1 // pred_region
      _
    $region13: #{tpu_custom_call.1} parent=1 // pred_fallthru
      _
    // Predicated region
    $region14: #{tpu_custom_call.1} parent=1 // pred_check
      _
    $region15: #{tpu_custom_call.1} parent=1 // pred_check_branch
      %20 = sbr.rel (0) target = $region17
    $region16: #{tpu_custom_call.1} parent=1 // pred_region
      _
    $region17: #{tpu_custom_call.1} parent=1 // pred_fallthru
      _
    // Predicated region
    $region18: #{tpu_custom_call.1} parent=1 // pred_check
      _
    $region19: #{tpu_custom_call.1} parent=1 // pred_check_branch
      %22 = sbr.rel (0) target = $region21
    $region20: #{tpu_custom_call.1} parent=1 // pred_region
      _
    $region21: #{tpu_custom_call.1} parent=1 // pred_fallthru
      _
    // Predicated region
    $region22: #{tpu_custom_call.1} parent=1 // pred_check
      _
    $region23: #{tpu_custom_call.1} parent=1 // pred_check_branch
      %24 = sbr.rel (0) target = $region25
    $region24: #{tpu_custom_call.1} parent=1 // pred_region
      _
    $region25: #{tpu_custom_call.1} parent=1 // pred_fallthru
      _
    // Predicated region
    $region26: #{tpu_custom_call.1} parent=1 // pred_check
      _
    $region27: #{tpu_custom_call.1} parent=1 // pred_check_branch
      %26 = sbr.rel (0) target = $region29
    $region28: #{tpu_custom_call.1} parent=1 // pred_region
      _
    $region29: #{tpu_custom_call.1} parent=1 // pred_fallthru
      _
    %v27 = vld [vmem:[%s0] sm:$0xff]
    %v28 = vld [vmem:[%s1] sm:$0xff]
    %v29 = vld [vmem:[%s1 + $0x8] sm:$0xff]
    %v30 = vld [vmem:[%s1 + $0x10] sm:$0xff]
    %v31 = vld [vmem:[%s1 + $0x18] sm:$0xff]
    %v32 = vld [vmem:[%s1 + $0x20] sm:$0xff]
    %v33 = vld [vmem:[%s1 + $0x28] sm:$0xff]
    %v34 = vld [vmem:[%s1 + $0x30] sm:$0xff]
    %v35 = vld [vmem:[%s1 + $0x38] sm:$0xff]
    %v36 = vld [vmem:[%s1 + $0x40] sm:$0xff]
    %v37 = vld [vmem:[%s1 + $0x48] sm:$0xff]
    %v38 = vld [vmem:[%s1 + $0x50] sm:$0xff]
    %v39 = vld [vmem:[%s1 + $0x58] sm:$0xff]
    %v40 = vld [vmem:[%s2] sm:$0x7]
    %v42 = vperm.slane %v40, 0
    %v43 = vperm.slane %v40, 1
    %v44 = vperm.slane %v40, 2
    %vm48 = vcmask 261120
    %v50 = vsel %vm48, %v27, 0
    %52 = vmatpush.msra.mxu0 0.0
    %53 = vmatpush.msra.mxu0 0.0
    %54 = vmatpush.msra.mxu0 0.0
    %55 = vmatpush.msra.mxu0 0.0
    %56 = vmatpush.msra.mxu0 0.0
    %57 = vmatpush.msra.mxu0 0.0
    %58 = vmatpush.msra.mxu0 0.0
    %59 = vmatpush.msra.mxu0 0.0
    %60 = vmatpush.msra.mxu0 0.0
    %61 = vmatpush.msra.mxu0 0.0
    %62 = vmatpush.msra.mxu0 0.0
    %63 = vmatpush.msra.mxu0 0.0
    %64 = vmatpush.msra.mxu0 %v37
    %65 = vmatpush.msra.mxu0 %v34
    %66 = vmatpush.msra.mxu0 %v31
    %67 = vmatpush.msra.mxu0 %v28
    %68 = vmatmul.f32.gmra.mxu0 %v50
    %v69 = vpop.f32.mrf.mxu0
    %v70 = vadd.f32 %v42, %v69
    %71 = vdwg.mxu0
    %72 = vmatpush.msra.mxu0 0.0
    %73 = vmatpush.msra.mxu0 0.0
    %74 = vmatpush.msra.mxu0 0.0
    %75 = vmatpush.msra.mxu0 0.0
    %76 = vmatpush.msra.mxu0 0.0
    %77 = vmatpush.msra.mxu0 0.0
    %78 = vmatpush.msra.mxu0 0.0
    %79 = vmatpush.msra.mxu0 0.0
    %80 = vmatpush.msra.mxu0 0.0
    %81 = vmatpush.msra.mxu0 0.0
    %82 = vmatpush.msra.mxu0 0.0
    %83 = vmatpush.msra.mxu0 0.0
    %84 = vmatpush.msra.mxu0 %v38
    %85 = vmatpush.msra.mxu0 %v35
    %86 = vmatpush.msra.mxu0 %v32
    %87 = vmatpush.msra.mxu0 %v29
    %88 = vmatmul.f32.gmra.mxu0 %v50
    %v89 = vpop.f32.mrf.mxu0
    %v90 = vadd.f32 %v43, %v89
    %91 = vdwg.mxu0
    %92 = vmatpush.msra.mxu0 0.0
    %93 = vmatpush.msra.mxu0 0.0
    %94 = vmatpush.msra.mxu0 0.0
    %95 = vmatpush.msra.mxu0 0.0
    %96 = vmatpush.msra.mxu0 0.0
    %97 = vmatpush.msra.mxu0 0.0
    %98 = vmatpush.msra.mxu0 0.0
    %99 = vmatpush.msra.mxu0 0.0
    %100 = vmatpush.msra.mxu0 0.0
    %101 = vmatpush.msra.mxu0 0.0
    %102 = vmatpush.msra.mxu0 0.0
    %103 = vmatpush.msra.mxu0 0.0
    %104 = vmatpush.msra.mxu0 %v39
    %105 = vmatpush.msra.mxu0 %v36
    %106 = vmatpush.msra.mxu0 %v33
    %107 = vmatpush.msra.mxu0 %v30
    %108 = vmatmul.f32.gmra.mxu0 %v50
    %v109 = vpop.f32.mrf.mxu0
    %v110 = vadd.f32 %v44, %v109
    %111 = vdwg.mxu0
    %v112 = vmax.f32 %v70, 0.0
    %v113 = vmax.f32 %v90, 0.0
    %v114 = vmax.f32 %v110, 0.0
    %v115 = vld [vmem:[%s3] sm:$0xff]
    %v116 = vld [vmem:[%s3 + $0x8] sm:$0xff]
    %v117 = vld [vmem:[%s3 + $0x10] sm:$0xff]
    %v118 = vld [vmem:[%s3 + $0x18] sm:$0xff]
    %v119 = vld [vmem:[%s3 + $0x20] sm:$0xff]
    %v120 = vld [vmem:[%s3 + $0x28] sm:$0xff]
    %v121 = vld [vmem:[%s3 + $0x30] sm:$0xff]
    %v122 = vld [vmem:[%s3 + $0x38] sm:$0xff]
    %v123 = vld [vmem:[%s3 + $0x40] sm:$0xff]
    %v124 = vld [vmem:[%s3 + $0x48] sm:$0xff]
    %v125 = vld [vmem:[%s3 + $0x50] sm:$0xff]
    %v126 = vld [vmem:[%s3 + $0x58] sm:$0xff]
    %v127 = vld [vmem:[%s3 + $0x60] sm:$0xff]
    %v128 = vld [vmem:[%s3 + $0x68] sm:$0xff]
    %v129 = vld [vmem:[%s3 + $0x70] sm:$0xff]
    %v130 = vld [vmem:[%s3 + $0x78] sm:$0xff]
    %v131 = vld [vmem:[%s3 + $0x80] sm:$0xff]
    %v132 = vld [vmem:[%s3 + $0x88] sm:$0xff]
    %v133 = vld [vmem:[%s3 + $0x90] sm:$0xff]
    %v134 = vld [vmem:[%s3 + $0x98] sm:$0xff]
    %v135 = vld [vmem:[%s3 + $0xa0] sm:$0xff]
    %v136 = vld [vmem:[%s3 + $0xa8] sm:$0xff]
    %v137 = vld [vmem:[%s3 + $0xb0] sm:$0xff]
    %v138 = vld [vmem:[%s3 + $0xb8] sm:$0xff]
    %v139 = vld [vmem:[%s3 + $0xc0] sm:$0xff]
    %v140 = vld [vmem:[%s3 + $0xc8] sm:$0xff]
    %v141 = vld [vmem:[%s3 + $0xd0] sm:$0xff]
    %v142 = vld [vmem:[%s3 + $0xd8] sm:$0xff]
    %v143 = vld [vmem:[%s3 + $0xe0] sm:$0xff]
    %v144 = vld [vmem:[%s3 + $0xe8] sm:$0xff]
    %v145 = vld [vmem:[%s3 + $0xf0] sm:$0xff]
    %v146 = vld [vmem:[%s3 + $0xf8] sm:$0xff]
    %v147 = vld [vmem:[%s3 + $0x100] sm:$0xff]
    %v148 = vld [vmem:[%s3 + $0x108] sm:$0xff]
    %v149 = vld [vmem:[%s3 + $0x110] sm:$0xff]
    %v150 = vld [vmem:[%s3 + $0x118] sm:$0xff]
    %v151 = vld [vmem:[%s3 + $0x120] sm:$0xff]
    %v152 = vld [vmem:[%s3 + $0x128] sm:$0xff]
    %v153 = vld [vmem:[%s3 + $0x130] sm:$0xff]
    %v154 = vld [vmem:[%s3 + $0x138] sm:$0xff]
    %v155 = vld [vmem:[%s3 + $0x140] sm:$0xff]
    %v156 = vld [vmem:[%s3 + $0x148] sm:$0xff]
    %v157 = vld [vmem:[%s3 + $0x150] sm:$0xff]
    %v158 = vld [vmem:[%s3 + $0x158] sm:$0xff]
    %v159 = vld [vmem:[%s3 + $0x160] sm:$0xff]
    %v160 = vld [vmem:[%s3 + $0x168] sm:$0xff]
    %v161 = vld [vmem:[%s3 + $0x170] sm:$0xff]
    %v162 = vld [vmem:[%s3 + $0x178] sm:$0xff]
    %v163 = vld [vmem:[%s3 + $0x180] sm:$0xff]
    %v164 = vld [vmem:[%s3 + $0x188] sm:$0xff]
    %v165 = vld [vmem:[%s3 + $0x190] sm:$0xff]
    %v166 = vld [vmem:[%s3 + $0x198] sm:$0xff]
    %v167 = vld [vmem:[%s3 + $0x1a0] sm:$0xff]
    %v168 = vld [vmem:[%s3 + $0x1a8] sm:$0xff]
    %v169 = vld [vmem:[%s3 + $0x1b0] sm:$0xff]
    %v170 = vld [vmem:[%s3 + $0x1b8] sm:$0xff]
    %v171 = vld [vmem:[%s3 + $0x1c0] sm:$0xff]
    %v172 = vld [vmem:[%s3 + $0x1c8] sm:$0xff]
    %v173 = vld [vmem:[%s3 + $0x1d0] sm:$0xff]
    %v174 = vld [vmem:[%s3 + $0x1d8] sm:$0xff]
    %v175 = vld [vmem:[%s3 + $0x1e0] sm:$0xff]
    %v176 = vld [vmem:[%s3 + $0x1e8] sm:$0xff]
    %v177 = vld [vmem:[%s3 + $0x1f0] sm:$0xff]
    %v178 = vld [vmem:[%s3 + $0x1f8] sm:$0xff]
    %v179 = vld [vmem:[%s3 + $0x200] sm:$0xff]
    %v180 = vld [vmem:[%s3 + $0x208] sm:$0xff]
    %v181 = vld [vmem:[%s3 + $0x210] sm:$0xff]
    %v182 = vld [vmem:[%s3 + $0x218] sm:$0xff]
    %v183 = vld [vmem:[%s3 + $0x220] sm:$0xff]
    %v184 = vld [vmem:[%s3 + $0x228] sm:$0xff]
    %v185 = vld [vmem:[%s3 + $0x230] sm:$0xff]
    %v186 = vld [vmem:[%s3 + $0x238] sm:$0xff]
    %v187 = vld [vmem:[%s3 + $0x240] sm:$0xff]
    %v188 = vld [vmem:[%s3 + $0x248] sm:$0xff]
    %v189 = vld [vmem:[%s3 + $0x250] sm:$0xff]
    %v190 = vld [vmem:[%s3 + $0x258] sm:$0xff]
    %v191 = vld [vmem:[%s3 + $0x260] sm:$0xff]
    %v192 = vld [vmem:[%s3 + $0x268] sm:$0xff]
    %v193 = vld [vmem:[%s3 + $0x270] sm:$0xff]
    %v194 = vld [vmem:[%s3 + $0x278] sm:$0xff]
    %v195 = vld [vmem:[%s3 + $0x280] sm:$0xff]
    %v196 = vld [vmem:[%s3 + $0x288] sm:$0xff]
    %v197 = vld [vmem:[%s3 + $0x290] sm:$0xff]
    %v198 = vld [vmem:[%s3 + $0x298] sm:$0xff]
    %v199 = vld [vmem:[%s3 + $0x2a0] sm:$0xff]
    %v200 = vld [vmem:[%s3 + $0x2a8] sm:$0xff]
    %v201 = vld [vmem:[%s3 + $0x2b0] sm:$0xff]
    %v202 = vld [vmem:[%s3 + $0x2b8] sm:$0xff]
    %v203 = vld [vmem:[%s3 + $0x2c0] sm:$0xff]
    %v204 = vld [vmem:[%s3 + $0x2c8] sm:$0xff]
    %v205 = vld [vmem:[%s3 + $0x2d0] sm:$0xff]
    %v206 = vld [vmem:[%s3 + $0x2d8] sm:$0xff]
    %v207 = vld [vmem:[%s3 + $0x2e0] sm:$0xff]
    %v208 = vld [vmem:[%s3 + $0x2e8] sm:$0xff]
    %v209 = vld [vmem:[%s3 + $0x2f0] sm:$0xff]
    %v210 = vld [vmem:[%s3 + $0x2f8] sm:$0xff]
    %v211 = vld [vmem:[%s3 + $0x300] sm:$0xff]
    %v212 = vld [vmem:[%s3 + $0x308] sm:$0xff]
    %v213 = vld [vmem:[%s3 + $0x310] sm:$0xff]
    %v214 = vld [vmem:[%s3 + $0x318] sm:$0xff]
    %v215 = vld [vmem:[%s3 + $0x320] sm:$0xff]
    %v216 = vld [vmem:[%s3 + $0x328] sm:$0xff]
    %v217 = vld [vmem:[%s3 + $0x330] sm:$0xff]
    %v218 = vld [vmem:[%s3 + $0x338] sm:$0xff]
    %v219 = vld [vmem:[%s3 + $0x340] sm:$0xff]
    %v220 = vld [vmem:[%s3 + $0x348] sm:$0xff]
    %v221 = vld [vmem:[%s3 + $0x350] sm:$0xff]
    %v222 = vld [vmem:[%s3 + $0x358] sm:$0xff]
    %v223 = vld [vmem:[%s3 + $0x360] sm:$0xff]
    %v224 = vld [vmem:[%s3 + $0x368] sm:$0xff]
    %v225 = vld [vmem:[%s3 + $0x370] sm:$0xff]
    %v226 = vld [vmem:[%s3 + $0x378] sm:$0xff]
    %v227 = vld [vmem:[%s3 + $0x380] sm:$0xff]
    %v228 = vld [vmem:[%s3 + $0x388] sm:$0xff]
    %v229 = vld [vmem:[%s3 + $0x390] sm:$0xff]
    %v230 = vld [vmem:[%s3 + $0x398] sm:$0xff]
    %v231 = vld [vmem:[%s3 + $0x3a0] sm:$0xff]
    %v232 = vld [vmem:[%s3 + $0x3a8] sm:$0xff]
    %v233 = vld [vmem:[%s3 + $0x3b0] sm:$0xff]
    %v234 = vld [vmem:[%s3 + $0x3b8] sm:$0xff]
    %v235 = vld [vmem:[%s3 + $0x3c0] sm:$0xff]
    %v236 = vld [vmem:[%s3 + $0x3c8] sm:$0xff]
    %v237 = vld [vmem:[%s3 + $0x3d0] sm:$0xff]
    %v238 = vld [vmem:[%s3 + $0x3d8] sm:$0xff]
    %v239 = vld [vmem:[%s3 + $0x3e0] sm:$0xff]
    %v240 = vld [vmem:[%s3 + $0x3e8] sm:$0xff]
    %v241 = vld [vmem:[%s3 + $0x3f0] sm:$0xff]
    %v242 = vld [vmem:[%s3 + $0x3f8] sm:$0xff]
    %v243 = vld [vmem:[%s3 + $0x400] sm:$0xff]
    %v244 = vld [vmem:[%s3 + $0x408] sm:$0xff]
    %v245 = vld [vmem:[%s3 + $0x410] sm:$0xff]
    %v246 = vld [vmem:[%s3 + $0x418] sm:$0xff]
    %v247 = vld [vmem:[%s3 + $0x420] sm:$0xff]
    %v248 = vld [vmem:[%s3 + $0x428] sm:$0xff]
    %v249 = vld [vmem:[%s3 + $0x430] sm:$0xff]
    %v250 = vld [vmem:[%s3 + $0x438] sm:$0xff]
    %v251 = vld [vmem:[%s3 + $0x440] sm:$0xff]
    %v252 = vld [vmem:[%s3 + $0x448] sm:$0xff]
    %v253 = vld [vmem:[%s3 + $0x450] sm:$0xff]
    %v254 = vld [vmem:[%s3 + $0x458] sm:$0xff]
    %v255 = vld [vmem:[%s3 + $0x460] sm:$0xff]
    %v256 = vld [vmem:[%s3 + $0x468] sm:$0xff]
    %v257 = vld [vmem:[%s3 + $0x470] sm:$0xff]
    %v258 = vld [vmem:[%s3 + $0x478] sm:$0xff]
    %v259 = vld [vmem:[%s3 + $0x480] sm:$0xff]
    %v260 = vld [vmem:[%s3 + $0x488] sm:$0xff]
    %v261 = vld [vmem:[%s3 + $0x490] sm:$0xff]
    %v262 = vld [vmem:[%s3 + $0x498] sm:$0xff]
    %v263 = vld [vmem:[%s3 + $0x4a0] sm:$0xff]
    %v264 = vld [vmem:[%s3 + $0x4a8] sm:$0xff]
    %v265 = vld [vmem:[%s3 + $0x4b0] sm:$0xff]
    %v266 = vld [vmem:[%s3 + $0x4b8] sm:$0xff]
    %v267 = vld [vmem:[%s3 + $0x4c0] sm:$0xff]
    %v268 = vld [vmem:[%s3 + $0x4c8] sm:$0xff]
    %v269 = vld [vmem:[%s3 + $0x4d0] sm:$0xff]
    %v270 = vld [vmem:[%s3 + $0x4d8] sm:$0xff]
    %v271 = vld [vmem:[%s3 + $0x4e0] sm:$0xff]
    %v272 = vld [vmem:[%s3 + $0x4e8] sm:$0xff]
    %v273 = vld [vmem:[%s3 + $0x4f0] sm:$0xff]
    %v274 = vld [vmem:[%s3 + $0x4f8] sm:$0xff]
    %v275 = vld [vmem:[%s3 + $0x500] sm:$0xff]
    %v276 = vld [vmem:[%s3 + $0x508] sm:$0xff]
    %v277 = vld [vmem:[%s3 + $0x510] sm:$0xff]
    %v278 = vld [vmem:[%s3 + $0x518] sm:$0xff]
    %v279 = vld [vmem:[%s3 + $0x520] sm:$0xff]
    %v280 = vld [vmem:[%s3 + $0x528] sm:$0xff]
    %v281 = vld [vmem:[%s3 + $0x530] sm:$0xff]
    %v282 = vld [vmem:[%s3 + $0x538] sm:$0xff]
    %v283 = vld [vmem:[%s3 + $0x540] sm:$0xff]
    %v284 = vld [vmem:[%s3 + $0x548] sm:$0xff]
    %v285 = vld [vmem:[%s3 + $0x550] sm:$0xff]
    %v286 = vld [vmem:[%s3 + $0x558] sm:$0xff]
    %v287 = vld [vmem:[%s3 + $0x560] sm:$0xff]
    %v288 = vld [vmem:[%s3 + $0x568] sm:$0xff]
    %v289 = vld [vmem:[%s3 + $0x570] sm:$0xff]
    %v290 = vld [vmem:[%s3 + $0x578] sm:$0xff]
    %v291 = vld [vmem:[%s3 + $0x580] sm:$0xff]
    %v292 = vld [vmem:[%s3 + $0x588] sm:$0xff]
    %v293 = vld [vmem:[%s3 + $0x590] sm:$0xff]
    %v294 = vld [vmem:[%s3 + $0x598] sm:$0xff]
    %v295 = vld [vmem:[%s3 + $0x5a0] sm:$0xff]
    %v296 = vld [vmem:[%s3 + $0x5a8] sm:$0xff]
    %v297 = vld [vmem:[%s3 + $0x5b0] sm:$0xff]
    %v298 = vld [vmem:[%s3 + $0x5b8] sm:$0xff]
    %v299 = vld [vmem:[%s3 + $0x5c0] sm:$0xff]
    %v300 = vld [vmem:[%s3 + $0x5c8] sm:$0xff]
    %v301 = vld [vmem:[%s3 + $0x5d0] sm:$0xff]
    %v302 = vld [vmem:[%s3 + $0x5d8] sm:$0xff]
    %v303 = vld [vmem:[%s3 + $0x5e0] sm:$0xff]
    %v304 = vld [vmem:[%s3 + $0x5e8] sm:$0xff]
    %v305 = vld [vmem:[%s3 + $0x5f0] sm:$0xff]
    %v306 = vld [vmem:[%s3 + $0x5f8] sm:$0xff]
    %v307 = vld [vmem:[%s3 + $0x600] sm:$0xff]
    %v308 = vld [vmem:[%s3 + $0x608] sm:$0xff]
    %v309 = vld [vmem:[%s3 + $0x610] sm:$0xff]
    %v310 = vld [vmem:[%s3 + $0x618] sm:$0xff]
    %v311 = vld [vmem:[%s3 + $0x620] sm:$0xff]
    %v312 = vld [vmem:[%s3 + $0x628] sm:$0xff]
    %v313 = vld [vmem:[%s3 + $0x630] sm:$0xff]
    %v314 = vld [vmem:[%s3 + $0x638] sm:$0xff]
    %v315 = vld [vmem:[%s3 + $0x640] sm:$0xff]
    %v316 = vld [vmem:[%s3 + $0x648] sm:$0xff]
    %v317 = vld [vmem:[%s3 + $0x650] sm:$0xff]
    %v318 = vld [vmem:[%s3 + $0x658] sm:$0xff]
    %v319 = vld [vmem:[%s3 + $0x660] sm:$0xff]
    %v320 = vld [vmem:[%s3 + $0x668] sm:$0xff]
    %v321 = vld [vmem:[%s3 + $0x670] sm:$0xff]
    %v322 = vld [vmem:[%s3 + $0x678] sm:$0xff]
    %v323 = vld [vmem:[%s3 + $0x680] sm:$0xff]
    %v324 = vld [vmem:[%s3 + $0x688] sm:$0xff]
    %v325 = vld [vmem:[%s3 + $0x690] sm:$0xff]
    %v326 = vld [vmem:[%s3 + $0x698] sm:$0xff]
    %v327 = vld [vmem:[%s3 + $0x6a0] sm:$0xff]
    %v328 = vld [vmem:[%s3 + $0x6a8] sm:$0xff]
    %v329 = vld [vmem:[%s3 + $0x6b0] sm:$0xff]
    %v330 = vld [vmem:[%s3 + $0x6b8] sm:$0xff]
    %v331 = vld [vmem:[%s3 + $0x6c0] sm:$0xff]
    %v332 = vld [vmem:[%s3 + $0x6c8] sm:$0xff]
    %v333 = vld [vmem:[%s3 + $0x6d0] sm:$0xff]
    %v334 = vld [vmem:[%s3 + $0x6d8] sm:$0xff]
    %v335 = vld [vmem:[%s3 + $0x6e0] sm:$0xff]
    %v336 = vld [vmem:[%s3 + $0x6e8] sm:$0xff]
    %v337 = vld [vmem:[%s3 + $0x6f0] sm:$0xff]
    %v338 = vld [vmem:[%s3 + $0x6f8] sm:$0xff]
    %v339 = vld [vmem:[%s3 + $0x700] sm:$0xff]
    %v340 = vld [vmem:[%s3 + $0x708] sm:$0xff]
    %v341 = vld [vmem:[%s3 + $0x710] sm:$0xff]
    %v342 = vld [vmem:[%s3 + $0x718] sm:$0xff]
    %v343 = vld [vmem:[%s3 + $0x720] sm:$0xff]
    %v344 = vld [vmem:[%s3 + $0x728] sm:$0xff]
    %v345 = vld [vmem:[%s3 + $0x730] sm:$0xff]
    %v346 = vld [vmem:[%s3 + $0x738] sm:$0xff]
    %v347 = vld [vmem:[%s3 + $0x740] sm:$0xff]
    %v348 = vld [vmem:[%s3 + $0x748] sm:$0xff]
    %v349 = vld [vmem:[%s3 + $0x750] sm:$0xff]
    %v350 = vld [vmem:[%s3 + $0x758] sm:$0xff]
    %v351 = vld [vmem:[%s3 + $0x760] sm:$0xff]
    %v352 = vld [vmem:[%s3 + $0x768] sm:$0xff]
    %v353 = vld [vmem:[%s3 + $0x770] sm:$0xff]
    %v354 = vld [vmem:[%s3 + $0x778] sm:$0xff]
    %v355 = vld [vmem:[%s4] sm:$0x1f]
    %v357 = vperm.slane %v355, 0
    %v358 = vperm.slane %v355, 1
    %v359 = vperm.slane %v355, 2
    %v360 = vperm.slane %v355, 3
    %v361 = vperm.slane %v355, 4
    %367 = vmatpush.msra.mxu0 %v190
    %368 = vmatpush.msra.mxu0 %v185
    %369 = vmatpush.msra.mxu0 %v180
    %370 = vmatpush.msra.mxu0 %v175
    %371 = vmatpush.msra.mxu0 %v170
    %372 = vmatpush.msra.mxu0 %v165
    %373 = vmatpush.msra.mxu0 %v160
    %374 = vmatpush.msra.mxu0 %v155
    %375 = vmatpush.msra.mxu0 %v150
    %376 = vmatpush.msra.mxu0 %v145
    %377 = vmatpush.msra.mxu0 %v140
    %378 = vmatpush.msra.mxu0 %v135
    %379 = vmatpush.msra.mxu0 %v130
    %380 = vmatpush.msra.mxu0 %v125
    %381 = vmatpush.msra.mxu0 %v120
    %382 = vmatpush.msra.mxu0 %v115
    %383 = vmatmul.f32.gmra.mxu0 %v112
    %v384 = vpop.f32.mrf.mxu0
    %v385 = vadd.f32 %v357, %v384
    %386 = vdwg.mxu0
    %387 = vmatpush.msra.mxu0 %v270
    %388 = vmatpush.msra.mxu0 %v265
    %389 = vmatpush.msra.mxu0 %v260
    %390 = vmatpush.msra.mxu0 %v255
    %391 = vmatpush.msra.mxu0 %v250
    %392 = vmatpush.msra.mxu0 %v245
    %393 = vmatpush.msra.mxu0 %v240
    %394 = vmatpush.msra.mxu0 %v235
    %395 = vmatpush.msra.mxu0 %v230
    %396 = vmatpush.msra.mxu0 %v225
    %397 = vmatpush.msra.mxu0 %v220
    %398 = vmatpush.msra.mxu0 %v215
    %399 = vmatpush.msra.mxu0 %v210
    %400 = vmatpush.msra.mxu0 %v205
    %401 = vmatpush.msra.mxu0 %v200
    %402 = vmatpush.msra.mxu0 %v195
    %403 = vmatmul.f32.gmra.mxu0 %v113
    %v404 = vpop.f32.mrf.mxu0
    %v405 = vadd.f32 %v385, %v404
    %406 = vdwg.mxu0
    %407 = vmatpush.msra.mxu0 %v350
    %408 = vmatpush.msra.mxu0 %v345
    %409 = vmatpush.msra.mxu0 %v340
    %410 = vmatpush.msra.mxu0 %v335
    %411 = vmatpush.msra.mxu0 %v330
    %412 = vmatpush.msra.mxu0 %v325
    %413 = vmatpush.msra.mxu0 %v320
    %414 = vmatpush.msra.mxu0 %v315
    %415 = vmatpush.msra.mxu0 %v310
    %416 = vmatpush.msra.mxu0 %v305
    %417 = vmatpush.msra.mxu0 %v300
    %418 = vmatpush.msra.mxu0 %v295
    %419 = vmatpush.msra.mxu0 %v290
    %420 = vmatpush.msra.mxu0 %v285
    %421 = vmatpush.msra.mxu0 %v280
    %422 = vmatpush.msra.mxu0 %v275
    %423 = vmatmul.f32.gmra.mxu0 %v114
    %v424 = vpop.f32.mrf.mxu0
    %v425 = vadd.f32 %v405, %v424
    %426 = vdwg.mxu0
    %427 = vmatpush.msra.mxu0 %v191
    %428 = vmatpush.msra.mxu0 %v186
    %429 = vmatpush.msra.mxu0 %v181
    %430 = vmatpush.msra.mxu0 %v176
    %431 = vmatpush.msra.mxu0 %v171
    %432 = vmatpush.msra.mxu0 %v166
    %433 = vmatpush.msra.mxu0 %v161
    %434 = vmatpush.msra.mxu0 %v156
    %435 = vmatpush.msra.mxu0 %v151
    %436 = vmatpush.msra.mxu0 %v146
    %437 = vmatpush.msra.mxu0 %v141
    %438 = vmatpush.msra.mxu0 %v136
    %439 = vmatpush.msra.mxu0 %v131
    %440 = vmatpush.msra.mxu0 %v126
    %441 = vmatpush.msra.mxu0 %v121
    %442 = vmatpush.msra.mxu0 %v116
    %443 = vmatmul.f32.gmra.mxu0 %v112
    %v444 = vpop.f32.mrf.mxu0
    %v445 = vadd.f32 %v358, %v444
    %446 = vdwg.mxu0
    %447 = vmatpush.msra.mxu0 %v271
    %448 = vmatpush.msra.mxu0 %v266
    %449 = vmatpush.msra.mxu0 %v261
    %450 = vmatpush.msra.mxu0 %v256
    %451 = vmatpush.msra.mxu0 %v251
    %452 = vmatpush.msra.mxu0 %v246
    %453 = vmatpush.msra.mxu0 %v241
    %454 = vmatpush.msra.mxu0 %v236
    %455 = vmatpush.msra.mxu0 %v231
    %456 = vmatpush.msra.mxu0 %v226
    %457 = vmatpush.msra.mxu0 %v221
    %458 = vmatpush.msra.mxu0 %v216
    %459 = vmatpush.msra.mxu0 %v211
    %460 = vmatpush.msra.mxu0 %v206
    %461 = vmatpush.msra.mxu0 %v201
    %462 = vmatpush.msra.mxu0 %v196
    %463 = vmatmul.f32.gmra.mxu0 %v113
    %v464 = vpop.f32.mrf.mxu0
    %v465 = vadd.f32 %v445, %v464
    %466 = vdwg.mxu0
    %467 = vmatpush.msra.mxu0 %v351
    %468 = vmatpush.msra.mxu0 %v346
    %469 = vmatpush.msra.mxu0 %v341
    %470 = vmatpush.msra.mxu0 %v336
    %471 = vmatpush.msra.mxu0 %v331
    %472 = vmatpush.msra.mxu0 %v326
    %473 = vmatpush.msra.mxu0 %v321
    %474 = vmatpush.msra.mxu0 %v316
    %475 = vmatpush.msra.mxu0 %v311
    %476 = vmatpush.msra.mxu0 %v306
    %477 = vmatpush.msra.mxu0 %v301
    %478 = vmatpush.msra.mxu0 %v296
    %479 = vmatpush.msra.mxu0 %v291
    %480 = vmatpush.msra.mxu0 %v286
    %481 = vmatpush.msra.mxu0 %v281
    %482 = vmatpush.msra.mxu0 %v276
    %483 = vmatmul.f32.gmra.mxu0 %v114
    %v484 = vpop.f32.mrf.mxu0
    %v485 = vadd.f32 %v465, %v484
    %486 = vdwg.mxu0
    %487 = vmatpush.msra.mxu0 %v192
    %488 = vmatpush.msra.mxu0 %v187
    %489 = vmatpush.msra.mxu0 %v182
    %490 = vmatpush.msra.mxu0 %v177
    %491 = vmatpush.msra.mxu0 %v172
    %492 = vmatpush.msra.mxu0 %v167
    %493 = vmatpush.msra.mxu0 %v162
    %494 = vmatpush.msra.mxu0 %v157
    %495 = vmatpush.msra.mxu0 %v152
    %496 = vmatpush.msra.mxu0 %v147
    %497 = vmatpush.msra.mxu0 %v142
    %498 = vmatpush.msra.mxu0 %v137
    %499 = vmatpush.msra.mxu0 %v132
    %500 = vmatpush.msra.mxu0 %v127
    %501 = vmatpush.msra.mxu0 %v122
    %502 = vmatpush.msra.mxu0 %v117
    %503 = vmatmul.f32.gmra.mxu0 %v112
    %v504 = vpop.f32.mrf.mxu0
    %v505 = vadd.f32 %v359, %v504
    %506 = vdwg.mxu0
    %507 = vmatpush.msra.mxu0 %v272
    %508 = vmatpush.msra.mxu0 %v267
    %509 = vmatpush.msra.mxu0 %v262
    %510 = vmatpush.msra.mxu0 %v257
    %511 = vmatpush.msra.mxu0 %v252
    %512 = vmatpush.msra.mxu0 %v247
    %513 = vmatpush.msra.mxu0 %v242
    %514 = vmatpush.msra.mxu0 %v237
    %515 = vmatpush.msra.mxu0 %v232
    %516 = vmatpush.msra.mxu0 %v227
    %517 = vmatpush.msra.mxu0 %v222
    %518 = vmatpush.msra.mxu0 %v217
    %519 = vmatpush.msra.mxu0 %v212
    %520 = vmatpush.msra.mxu0 %v207
    %521 = vmatpush.msra.mxu0 %v202
    %522 = vmatpush.msra.mxu0 %v197
    %523 = vmatmul.f32.gmra.mxu0 %v113
    %v524 = vpop.f32.mrf.mxu0
    %v525 = vadd.f32 %v505, %v524
    %526 = vdwg.mxu0
    %527 = vmatpush.msra.mxu0 %v352
    %528 = vmatpush.msra.mxu0 %v347
    %529 = vmatpush.msra.mxu0 %v342
    %530 = vmatpush.msra.mxu0 %v337
    %531 = vmatpush.msra.mxu0 %v332
    %532 = vmatpush.msra.mxu0 %v327
    %533 = vmatpush.msra.mxu0 %v322
    %534 = vmatpush.msra.mxu0 %v317
    %535 = vmatpush.msra.mxu0 %v312
    %536 = vmatpush.msra.mxu0 %v307
    %537 = vmatpush.msra.mxu0 %v302
    %538 = vmatpush.msra.mxu0 %v297
    %539 = vmatpush.msra.mxu0 %v292
    %540 = vmatpush.msra.mxu0 %v287
    %541 = vmatpush.msra.mxu0 %v282
    %542 = vmatpush.msra.mxu0 %v277
    %543 = vmatmul.f32.gmra.mxu0 %v114
    %v544 = vpop.f32.mrf.mxu0
    %v545 = vadd.f32 %v525, %v544
    %546 = vdwg.mxu0
    %547 = vmatpush.msra.mxu0 %v193
    %548 = vmatpush.msra.mxu0 %v188
    %549 = vmatpush.msra.mxu0 %v183
    %550 = vmatpush.msra.mxu0 %v178
    %551 = vmatpush.msra.mxu0 %v173
    %552 = vmatpush.msra.mxu0 %v168
    %553 = vmatpush.msra.mxu0 %v163
    %554 = vmatpush.msra.mxu0 %v158
    %555 = vmatpush.msra.mxu0 %v153
    %556 = vmatpush.msra.mxu0 %v148
    %557 = vmatpush.msra.mxu0 %v143
    %558 = vmatpush.msra.mxu0 %v138
    %559 = vmatpush.msra.mxu0 %v133
    %560 = vmatpush.msra.mxu0 %v128
    %561 = vmatpush.msra.mxu0 %v123
    %562 = vmatpush.msra.mxu0 %v118
    %563 = vmatmul.f32.gmra.mxu0 %v112
    %v564 = vpop.f32.mrf.mxu0
    %v565 = vadd.f32 %v360, %v564
    %566 = vdwg.mxu0
    %567 = vmatpush.msra.mxu0 %v273
    %568 = vmatpush.msra.mxu0 %v268
    %569 = vmatpush.msra.mxu0 %v263
    %570 = vmatpush.msra.mxu0 %v258
    %571 = vmatpush.msra.mxu0 %v253
    %572 = vmatpush.msra.mxu0 %v248
    %573 = vmatpush.msra.mxu0 %v243
    %574 = vmatpush.msra.mxu0 %v238
    %575 = vmatpush.msra.mxu0 %v233
    %576 = vmatpush.msra.mxu0 %v228
    %577 = vmatpush.msra.mxu0 %v223
    %578 = vmatpush.msra.mxu0 %v218
    %579 = vmatpush.msra.mxu0 %v213
    %580 = vmatpush.msra.mxu0 %v208
    %581 = vmatpush.msra.mxu0 %v203
    %582 = vmatpush.msra.mxu0 %v198
    %583 = vmatmul.f32.gmra.mxu0 %v113
    %v584 = vpop.f32.mrf.mxu0
    %v585 = vadd.f32 %v565, %v584
    %586 = vdwg.mxu0
    %587 = vmatpush.msra.mxu0 %v353
    %588 = vmatpush.msra.mxu0 %v348
    %589 = vmatpush.msra.mxu0 %v343
    %590 = vmatpush.msra.mxu0 %v338
    %591 = vmatpush.msra.mxu0 %v333
    %592 = vmatpush.msra.mxu0 %v328
    %593 = vmatpush.msra.mxu0 %v323
    %594 = vmatpush.msra.mxu0 %v318
    %595 = vmatpush.msra.mxu0 %v313
    %596 = vmatpush.msra.mxu0 %v308
    %597 = vmatpush.msra.mxu0 %v303
    %598 = vmatpush.msra.mxu0 %v298
    %599 = vmatpush.msra.mxu0 %v293
    %600 = vmatpush.msra.mxu0 %v288
    %601 = vmatpush.msra.mxu0 %v283
    %602 = vmatpush.msra.mxu0 %v278
    %603 = vmatmul.f32.gmra.mxu0 %v114
    %v604 = vpop.f32.mrf.mxu0
    %v605 = vadd.f32 %v585, %v604
    %606 = vdwg.mxu0
    %607 = vmatpush.msra.mxu0 %v194
    %608 = vmatpush.msra.mxu0 %v189
    %609 = vmatpush.msra.mxu0 %v184
    %610 = vmatpush.msra.mxu0 %v179
    %611 = vmatpush.msra.mxu0 %v174
    %612 = vmatpush.msra.mxu0 %v169
    %613 = vmatpush.msra.mxu0 %v164
    %614 = vmatpush.msra.mxu0 %v159
    %615 = vmatpush.msra.mxu0 %v154
    %616 = vmatpush.msra.mxu0 %v149
    %617 = vmatpush.msra.mxu0 %v144
    %618 = vmatpush.msra.mxu0 %v139
    %619 = vmatpush.msra.mxu0 %v134
    %620 = vmatpush.msra.mxu0 %v129
    %621 = vmatpush.msra.mxu0 %v124
    %622 = vmatpush.msra.mxu0 %v119
    %623 = vmatmul.f32.gmra.mxu0 %v112
    %v624 = vpop.f32.mrf.mxu0
    %v625 = vadd.f32 %v361, %v624
    %626 = vdwg.mxu0
    %627 = vmatpush.msra.mxu0 %v274
    %628 = vmatpush.msra.mxu0 %v269
    %629 = vmatpush.msra.mxu0 %v264
    %630 = vmatpush.msra.mxu0 %v259
    %631 = vmatpush.msra.mxu0 %v254
    %632 = vmatpush.msra.mxu0 %v249
    %633 = vmatpush.msra.mxu0 %v244
    %634 = vmatpush.msra.mxu0 %v239
    %635 = vmatpush.msra.mxu0 %v234
    %636 = vmatpush.msra.mxu0 %v229
    %637 = vmatpush.msra.mxu0 %v224
    %638 = vmatpush.msra.mxu0 %v219
    %639 = vmatpush.msra.mxu0 %v214
    %640 = vmatpush.msra.mxu0 %v209
    %641 = vmatpush.msra.mxu0 %v204
    %642 = vmatpush.msra.mxu0 %v199
    %643 = vmatmul.f32.gmra.mxu0 %v113
    %v644 = vpop.f32.mrf.mxu0
    %v645 = vadd.f32 %v625, %v644
    %646 = vdwg.mxu0
    %647 = vmatpush.msra.mxu0 %v354
    %648 = vmatpush.msra.mxu0 %v349
    %649 = vmatpush.msra.mxu0 %v344
    %650 = vmatpush.msra.mxu0 %v339
    %651 = vmatpush.msra.mxu0 %v334
    %652 = vmatpush.msra.mxu0 %v329
    %653 = vmatpush.msra.mxu0 %v324
    %654 = vmatpush.msra.mxu0 %v319
    %655 = vmatpush.msra.mxu0 %v314
    %656 = vmatpush.msra.mxu0 %v309
    %657 = vmatpush.msra.mxu0 %v304
    %658 = vmatpush.msra.mxu0 %v299
    %659 = vmatpush.msra.mxu0 %v294
    %660 = vmatpush.msra.mxu0 %v289
    %661 = vmatpush.msra.mxu0 %v284
    %662 = vmatpush.msra.mxu0 %v279
    %663 = vmatmul.f32.gmra.mxu0 %v114
    %v664 = vpop.f32.mrf.mxu0
    %v665 = vadd.f32 %v645, %v664
    %666 = vdwg.mxu0
    %v667 = vmax.f32 %v425, 0.0
    %v668 = vmax.f32 %v485, 0.0
    %v669 = vmax.f32 %v545, 0.0
    %v670 = vmax.f32 %v605, 0.0
    %v671 = vmax.f32 %v665, 0.0
    %v672 = vld [vmem:[%s5] sm:$0xff]
    %v673 = vld [vmem:[%s5 + $0x8] sm:$0xff]
    %v674 = vld [vmem:[%s5 + $0x10] sm:$0xff]
    %v675 = vld [vmem:[%s5 + $0x18] sm:$0xff]
    %v676 = vld [vmem:[%s5 + $0x20] sm:$0xff]
    %v677 = vld [vmem:[%s5 + $0x28] sm:$0xff]
    %v678 = vld [vmem:[%s5 + $0x30] sm:$0xff]
    %v679 = vld [vmem:[%s5 + $0x38] sm:$0xff]
    %v680 = vld [vmem:[%s5 + $0x40] sm:$0xff]
    %v681 = vld [vmem:[%s5 + $0x48] sm:$0xff]
    %v682 = vld [vmem:[%s5 + $0x50] sm:$0xff]
    %v683 = vld [vmem:[%s5 + $0x58] sm:$0xff]
    %v684 = vld [vmem:[%s5 + $0x60] sm:$0xff]
    %v685 = vld [vmem:[%s5 + $0x68] sm:$0xff]
    %v686 = vld [vmem:[%s5 + $0x70] sm:$0xff]
    %v687 = vld [vmem:[%s5 + $0x78] sm:$0xff]
    %v688 = vld [vmem:[%s5 + $0x80] sm:$0xff]
    %v689 = vld [vmem:[%s5 + $0x88] sm:$0xff]
    %v690 = vld [vmem:[%s5 + $0x90] sm:$0xff]
    %v691 = vld [vmem:[%s5 + $0x98] sm:$0xff]
    %v692 = vld [vmem:[%s5 + $0xa0] sm:$0xff]
    %v693 = vld [vmem:[%s5 + $0xa8] sm:$0xff]
    %v694 = vld [vmem:[%s5 + $0xb0] sm:$0xff]
    %v695 = vld [vmem:[%s5 + $0xb8] sm:$0xff]
    %v696 = vld [vmem:[%s5 + $0xc0] sm:$0xff]
    %v697 = vld [vmem:[%s5 + $0xc8] sm:$0xff]
    %v698 = vld [vmem:[%s5 + $0xd0] sm:$0xff]
    %v699 = vld [vmem:[%s5 + $0xd8] sm:$0xff]
    %v700 = vld [vmem:[%s5 + $0xe0] sm:$0xff]
    %v701 = vld [vmem:[%s5 + $0xe8] sm:$0xff]
    %v702 = vld [vmem:[%s5 + $0xf0] sm:$0xff]
    %v703 = vld [vmem:[%s5 + $0xf8] sm:$0xff]
    %v704 = vld [vmem:[%s5 + $0x100] sm:$0xff]
    %v705 = vld [vmem:[%s5 + $0x108] sm:$0xff]
    %v706 = vld [vmem:[%s5 + $0x110] sm:$0xff]
    %v707 = vld [vmem:[%s5 + $0x118] sm:$0xff]
    %v708 = vld [vmem:[%s5 + $0x120] sm:$0xff]
    %v709 = vld [vmem:[%s5 + $0x128] sm:$0xff]
    %v710 = vld [vmem:[%s5 + $0x130] sm:$0xff]
    %v711 = vld [vmem:[%s5 + $0x138] sm:$0xff]
    %v712 = vld [vmem:[%s5 + $0x140] sm:$0xff]
    %v713 = vld [vmem:[%s5 + $0x148] sm:$0xff]
    %v714 = vld [vmem:[%s5 + $0x150] sm:$0xff]
    %v715 = vld [vmem:[%s5 + $0x158] sm:$0xff]
    %v716 = vld [vmem:[%s5 + $0x160] sm:$0xff]
    %v717 = vld [vmem:[%s5 + $0x168] sm:$0xff]
    %v718 = vld [vmem:[%s5 + $0x170] sm:$0xff]
    %v719 = vld [vmem:[%s5 + $0x178] sm:$0xff]
    %v720 = vld [vmem:[%s5 + $0x180] sm:$0xff]
    %v721 = vld [vmem:[%s5 + $0x188] sm:$0xff]
    %v722 = vld [vmem:[%s5 + $0x190] sm:$0xff]
    %v723 = vld [vmem:[%s5 + $0x198] sm:$0xff]
    %v724 = vld [vmem:[%s5 + $0x1a0] sm:$0xff]
    %v725 = vld [vmem:[%s5 + $0x1a8] sm:$0xff]
    %v726 = vld [vmem:[%s5 + $0x1b0] sm:$0xff]
    %v727 = vld [vmem:[%s5 + $0x1b8] sm:$0xff]
    %v728 = vld [vmem:[%s5 + $0x1c0] sm:$0xff]
    %v729 = vld [vmem:[%s5 + $0x1c8] sm:$0xff]
    %v730 = vld [vmem:[%s5 + $0x1d0] sm:$0xff]
    %v731 = vld [vmem:[%s5 + $0x1d8] sm:$0xff]
    %v732 = vld [vmem:[%s5 + $0x1e0] sm:$0xff]
    %v733 = vld [vmem:[%s5 + $0x1e8] sm:$0xff]
    %v734 = vld [vmem:[%s5 + $0x1f0] sm:$0xff]
    %v735 = vld [vmem:[%s5 + $0x1f8] sm:$0xff]
    %v736 = vld [vmem:[%s5 + $0x200] sm:$0xff]
    %v737 = vld [vmem:[%s5 + $0x208] sm:$0xff]
    %v738 = vld [vmem:[%s5 + $0x210] sm:$0xff]
    %v739 = vld [vmem:[%s5 + $0x218] sm:$0xff]
    %v740 = vld [vmem:[%s5 + $0x220] sm:$0xff]
    %v741 = vld [vmem:[%s5 + $0x228] sm:$0xff]
    %v742 = vld [vmem:[%s5 + $0x230] sm:$0xff]
    %v743 = vld [vmem:[%s5 + $0x238] sm:$0xff]
    %v744 = vld [vmem:[%s5 + $0x240] sm:$0xff]
    %v745 = vld [vmem:[%s5 + $0x248] sm:$0xff]
    %v746 = vld [vmem:[%s5 + $0x250] sm:$0xff]
    %v747 = vld [vmem:[%s5 + $0x258] sm:$0xff]
    %v748 = vld [vmem:[%s5 + $0x260] sm:$0xff]
    %v749 = vld [vmem:[%s5 + $0x268] sm:$0xff]
    %v750 = vld [vmem:[%s5 + $0x270] sm:$0xff]
    %v751 = vld [vmem:[%s5 + $0x278] sm:$0xff]
    %v752 = vld [vmem:[%s5 + $0x280] sm:$0xff]
    %v753 = vld [vmem:[%s5 + $0x288] sm:$0xff]
    %v754 = vld [vmem:[%s5 + $0x290] sm:$0xff]
    %v755 = vld [vmem:[%s5 + $0x298] sm:$0xff]
    %v756 = vld [vmem:[%s5 + $0x2a0] sm:$0xff]
    %v757 = vld [vmem:[%s5 + $0x2a8] sm:$0xff]
    %v758 = vld [vmem:[%s5 + $0x2b0] sm:$0xff]
    %v759 = vld [vmem:[%s5 + $0x2b8] sm:$0xff]
    %v760 = vld [vmem:[%s5 + $0x2c0] sm:$0xff]
    %v761 = vld [vmem:[%s5 + $0x2c8] sm:$0xff]
    %v762 = vld [vmem:[%s5 + $0x2d0] sm:$0xff]
    %v763 = vld [vmem:[%s5 + $0x2d8] sm:$0xff]
    %v764 = vld [vmem:[%s5 + $0x2e0] sm:$0xff]
    %v765 = vld [vmem:[%s5 + $0x2e8] sm:$0xff]
    %v766 = vld [vmem:[%s5 + $0x2f0] sm:$0xff]
    %v767 = vld [vmem:[%s5 + $0x2f8] sm:$0xff]
    %v768 = vld [vmem:[%s5 + $0x300] sm:$0xff]
    %v769 = vld [vmem:[%s5 + $0x308] sm:$0xff]
    %v770 = vld [vmem:[%s5 + $0x310] sm:$0xff]
    %v771 = vld [vmem:[%s5 + $0x318] sm:$0xff]
    %v772 = vld [vmem:[%s5 + $0x320] sm:$0xff]
    %v773 = vld [vmem:[%s5 + $0x328] sm:$0xff]
    %v774 = vld [vmem:[%s5 + $0x330] sm:$0xff]
    %v775 = vld [vmem:[%s5 + $0x338] sm:$0xff]
    %v776 = vld [vmem:[%s5 + $0x340] sm:$0xff]
    %v777 = vld [vmem:[%s5 + $0x348] sm:$0xff]
    %v778 = vld [vmem:[%s5 + $0x350] sm:$0xff]
    %v779 = vld [vmem:[%s5 + $0x358] sm:$0xff]
    %v780 = vld [vmem:[%s5 + $0x360] sm:$0xff]
    %v781 = vld [vmem:[%s5 + $0x368] sm:$0xff]
    %v782 = vld [vmem:[%s5 + $0x370] sm:$0xff]
    %v783 = vld [vmem:[%s5 + $0x378] sm:$0xff]
    %v784 = vld [vmem:[%s5 + $0x380] sm:$0xff]
    %v785 = vld [vmem:[%s5 + $0x388] sm:$0xff]
    %v786 = vld [vmem:[%s5 + $0x390] sm:$0xff]
    %v787 = vld [vmem:[%s5 + $0x398] sm:$0xff]
    %v788 = vld [vmem:[%s5 + $0x3a0] sm:$0xff]
    %v789 = vld [vmem:[%s5 + $0x3a8] sm:$0xff]
    %v790 = vld [vmem:[%s5 + $0x3b0] sm:$0xff]
    %v791 = vld [vmem:[%s5 + $0x3b8] sm:$0xff]
    %v792 = vld [vmem:[%s5 + $0x3c0] sm:$0xff]
    %v793 = vld [vmem:[%s5 + $0x3c8] sm:$0xff]
    %v794 = vld [vmem:[%s5 + $0x3d0] sm:$0xff]
    %v795 = vld [vmem:[%s5 + $0x3d8] sm:$0xff]
    %v796 = vld [vmem:[%s5 + $0x3e0] sm:$0xff]
    %v797 = vld [vmem:[%s5 + $0x3e8] sm:$0xff]
    %v798 = vld [vmem:[%s5 + $0x3f0] sm:$0xff]
    %v799 = vld [vmem:[%s5 + $0x3f8] sm:$0xff]
    %v800 = vld [vmem:[%s5 + $0x400] sm:$0xff]
    %v801 = vld [vmem:[%s5 + $0x408] sm:$0xff]
    %v802 = vld [vmem:[%s5 + $0x410] sm:$0xff]
    %v803 = vld [vmem:[%s5 + $0x418] sm:$0xff]
    %v804 = vld [vmem:[%s5 + $0x420] sm:$0xff]
    %v805 = vld [vmem:[%s5 + $0x428] sm:$0xff]
    %v806 = vld [vmem:[%s5 + $0x430] sm:$0xff]
    %v807 = vld [vmem:[%s5 + $0x438] sm:$0xff]
    %v808 = vld [vmem:[%s5 + $0x440] sm:$0xff]
    %v809 = vld [vmem:[%s5 + $0x448] sm:$0xff]
    %v810 = vld [vmem:[%s5 + $0x450] sm:$0xff]
    %v811 = vld [vmem:[%s5 + $0x458] sm:$0xff]
    %v812 = vld [vmem:[%s5 + $0x460] sm:$0xff]
    %v813 = vld [vmem:[%s5 + $0x468] sm:$0xff]
    %v814 = vld [vmem:[%s5 + $0x470] sm:$0xff]
    %v815 = vld [vmem:[%s5 + $0x478] sm:$0xff]
    %v816 = vld [vmem:[%s5 + $0x480] sm:$0xff]
    %v817 = vld [vmem:[%s5 + $0x488] sm:$0xff]
    %v818 = vld [vmem:[%s5 + $0x490] sm:$0xff]
    %v819 = vld [vmem:[%s5 + $0x498] sm:$0xff]
    %v820 = vld [vmem:[%s5 + $0x4a0] sm:$0xff]
    %v821 = vld [vmem:[%s5 + $0x4a8] sm:$0xff]
    %v822 = vld [vmem:[%s5 + $0x4b0] sm:$0xff]
    %v823 = vld [vmem:[%s5 + $0x4b8] sm:$0xff]
    %v824 = vld [vmem:[%s5 + $0x4c0] sm:$0xff]
    %v825 = vld [vmem:[%s5 + $0x4c8] sm:$0xff]
    %v826 = vld [vmem:[%s5 + $0x4d0] sm:$0xff]
    %v827 = vld [vmem:[%s5 + $0x4d8] sm:$0xff]
    %v828 = vld [vmem:[%s5 + $0x4e0] sm:$0xff]
    %v829 = vld [vmem:[%s5 + $0x4e8] sm:$0xff]
    %v830 = vld [vmem:[%s5 + $0x4f0] sm:$0xff]
    %v831 = vld [vmem:[%s5 + $0x4f8] sm:$0xff]
    %v832 = vld [vmem:[%s5 + $0x500] sm:$0xff]
    %v833 = vld [vmem:[%s5 + $0x508] sm:$0xff]
    %v834 = vld [vmem:[%s5 + $0x510] sm:$0xff]
    %v835 = vld [vmem:[%s5 + $0x518] sm:$0xff]
    %v836 = vld [vmem:[%s5 + $0x520] sm:$0xff]
    %v837 = vld [vmem:[%s5 + $0x528] sm:$0xff]
    %v838 = vld [vmem:[%s5 + $0x530] sm:$0xff]
    %v839 = vld [vmem:[%s5 + $0x538] sm:$0xff]
    %v840 = vld [vmem:[%s5 + $0x540] sm:$0xff]
    %v841 = vld [vmem:[%s5 + $0x548] sm:$0xff]
    %v842 = vld [vmem:[%s5 + $0x550] sm:$0xff]
    %v843 = vld [vmem:[%s5 + $0x558] sm:$0xff]
    %v844 = vld [vmem:[%s5 + $0x560] sm:$0xff]
    %v845 = vld [vmem:[%s5 + $0x568] sm:$0xff]
    %v846 = vld [vmem:[%s5 + $0x570] sm:$0xff]
    %v847 = vld [vmem:[%s5 + $0x578] sm:$0xff]
    %v848 = vld [vmem:[%s5 + $0x580] sm:$0xff]
    %v849 = vld [vmem:[%s5 + $0x588] sm:$0xff]
    %v850 = vld [vmem:[%s5 + $0x590] sm:$0xff]
    %v851 = vld [vmem:[%s5 + $0x598] sm:$0xff]
    %v852 = vld [vmem:[%s5 + $0x5a0] sm:$0xff]
    %v853 = vld [vmem:[%s5 + $0x5a8] sm:$0xff]
    %v854 = vld [vmem:[%s5 + $0x5b0] sm:$0xff]
    %v855 = vld [vmem:[%s5 + $0x5b8] sm:$0xff]
    %v856 = vld [vmem:[%s5 + $0x5c0] sm:$0xff]
    %v857 = vld [vmem:[%s5 + $0x5c8] sm:$0xff]
    %v858 = vld [vmem:[%s5 + $0x5d0] sm:$0xff]
    %v859 = vld [vmem:[%s5 + $0x5d8] sm:$0xff]
    %v860 = vld [vmem:[%s5 + $0x5e0] sm:$0xff]
    %v861 = vld [vmem:[%s5 + $0x5e8] sm:$0xff]
    %v862 = vld [vmem:[%s5 + $0x5f0] sm:$0xff]
    %v863 = vld [vmem:[%s5 + $0x5f8] sm:$0xff]
    %v864 = vld [vmem:[%s5 + $0x600] sm:$0xff]
    %v865 = vld [vmem:[%s5 + $0x608] sm:$0xff]
    %v866 = vld [vmem:[%s5 + $0x610] sm:$0xff]
    %v867 = vld [vmem:[%s5 + $0x618] sm:$0xff]
    %v868 = vld [vmem:[%s5 + $0x620] sm:$0xff]
    %v869 = vld [vmem:[%s5 + $0x628] sm:$0xff]
    %v870 = vld [vmem:[%s5 + $0x630] sm:$0xff]
    %v871 = vld [vmem:[%s5 + $0x638] sm:$0xff]
    %v872 = vld [vmem:[%s5 + $0x640] sm:$0xff]
    %v873 = vld [vmem:[%s5 + $0x648] sm:$0xff]
    %v874 = vld [vmem:[%s5 + $0x650] sm:$0xff]
    %v875 = vld [vmem:[%s5 + $0x658] sm:$0xff]
    %v876 = vld [vmem:[%s5 + $0x660] sm:$0xff]
    %v877 = vld [vmem:[%s5 + $0x668] sm:$0xff]
    %v878 = vld [vmem:[%s5 + $0x670] sm:$0xff]
    %v879 = vld [vmem:[%s5 + $0x678] sm:$0xff]
    %v880 = vld [vmem:[%s5 + $0x680] sm:$0xff]
    %v881 = vld [vmem:[%s5 + $0x688] sm:$0xff]
    %v882 = vld [vmem:[%s5 + $0x690] sm:$0xff]
    %v883 = vld [vmem:[%s5 + $0x698] sm:$0xff]
    %v884 = vld [vmem:[%s5 + $0x6a0] sm:$0xff]
    %v885 = vld [vmem:[%s5 + $0x6a8] sm:$0xff]
    %v886 = vld [vmem:[%s5 + $0x6b0] sm:$0xff]
    %v887 = vld [vmem:[%s5 + $0x6b8] sm:$0xff]
    %v888 = vld [vmem:[%s5 + $0x6c0] sm:$0xff]
    %v889 = vld [vmem:[%s5 + $0x6c8] sm:$0xff]
    %v890 = vld [vmem:[%s5 + $0x6d0] sm:$0xff]
    %v891 = vld [vmem:[%s5 + $0x6d8] sm:$0xff]
    %v892 = vld [vmem:[%s5 + $0x6e0] sm:$0xff]
    %v893 = vld [vmem:[%s5 + $0x6e8] sm:$0xff]
    %v894 = vld [vmem:[%s5 + $0x6f0] sm:$0xff]
    %v895 = vld [vmem:[%s5 + $0x6f8] sm:$0xff]
    %v896 = vld [vmem:[%s5 + $0x700] sm:$0xff]
    %v897 = vld [vmem:[%s5 + $0x708] sm:$0xff]
    %v898 = vld [vmem:[%s5 + $0x710] sm:$0xff]
    %v899 = vld [vmem:[%s5 + $0x718] sm:$0xff]
    %v900 = vld [vmem:[%s5 + $0x720] sm:$0xff]
    %v901 = vld [vmem:[%s5 + $0x728] sm:$0xff]
    %v902 = vld [vmem:[%s5 + $0x730] sm:$0xff]
    %v903 = vld [vmem:[%s5 + $0x738] sm:$0xff]
    %v904 = vld [vmem:[%s5 + $0x740] sm:$0xff]
    %v905 = vld [vmem:[%s5 + $0x748] sm:$0xff]
    %v906 = vld [vmem:[%s5 + $0x750] sm:$0xff]
    %v907 = vld [vmem:[%s5 + $0x758] sm:$0xff]
    %v908 = vld [vmem:[%s5 + $0x760] sm:$0xff]
    %v909 = vld [vmem:[%s5 + $0x768] sm:$0xff]
    %v910 = vld [vmem:[%s5 + $0x770] sm:$0xff]
    %v911 = vld [vmem:[%s5 + $0x778] sm:$0xff]
    %v912 = vld [vmem:[%s5 + $0x780] sm:$0xff]
    %v913 = vld [vmem:[%s5 + $0x788] sm:$0xff]
    %v914 = vld [vmem:[%s5 + $0x790] sm:$0xff]
    %v915 = vld [vmem:[%s5 + $0x798] sm:$0xff]
    %v916 = vld [vmem:[%s5 + $0x7a0] sm:$0xff]
    %v917 = vld [vmem:[%s5 + $0x7a8] sm:$0xff]
    %v918 = vld [vmem:[%s5 + $0x7b0] sm:$0xff]
    %v919 = vld [vmem:[%s5 + $0x7b8] sm:$0xff]
    %v920 = vld [vmem:[%s5 + $0x7c0] sm:$0xff]
    %v921 = vld [vmem:[%s5 + $0x7c8] sm:$0xff]
    %v922 = vld [vmem:[%s5 + $0x7d0] sm:$0xff]
    %v923 = vld [vmem:[%s5 + $0x7d8] sm:$0xff]
    %v924 = vld [vmem:[%s5 + $0x7e0] sm:$0xff]
    %v925 = vld [vmem:[%s5 + $0x7e8] sm:$0xff]
    %v926 = vld [vmem:[%s5 + $0x7f0] sm:$0xff]
    %v927 = vld [vmem:[%s5 + $0x7f8] sm:$0xff]
    %v928 = vld [vmem:[%s5 + $0x800] sm:$0xff]
    %v929 = vld [vmem:[%s5 + $0x808] sm:$0xff]
    %v930 = vld [vmem:[%s5 + $0x810] sm:$0xff]
    %v931 = vld [vmem:[%s5 + $0x818] sm:$0xff]
    %v932 = vld [vmem:[%s5 + $0x820] sm:$0xff]
    %v933 = vld [vmem:[%s5 + $0x828] sm:$0xff]
    %v934 = vld [vmem:[%s5 + $0x830] sm:$0xff]
    %v935 = vld [vmem:[%s5 + $0x838] sm:$0xff]
    %v936 = vld [vmem:[%s5 + $0x840] sm:$0xff]
    %v937 = vld [vmem:[%s5 + $0x848] sm:$0xff]
    %v938 = vld [vmem:[%s5 + $0x850] sm:$0xff]
    %v939 = vld [vmem:[%s5 + $0x858] sm:$0xff]
    %v940 = vld [vmem:[%s5 + $0x860] sm:$0xff]
    %v941 = vld [vmem:[%s5 + $0x868] sm:$0xff]
    %v942 = vld [vmem:[%s5 + $0x870] sm:$0xff]
    %v943 = vld [vmem:[%s5 + $0x878] sm:$0xff]
    %v944 = vld [vmem:[%s5 + $0x880] sm:$0xff]
    %v945 = vld [vmem:[%s5 + $0x888] sm:$0xff]
    %v946 = vld [vmem:[%s5 + $0x890] sm:$0xff]
    %v947 = vld [vmem:[%s5 + $0x898] sm:$0xff]
    %v948 = vld [vmem:[%s5 + $0x8a0] sm:$0xff]
    %v949 = vld [vmem:[%s5 + $0x8a8] sm:$0xff]
    %v950 = vld [vmem:[%s5 + $0x8b0] sm:$0xff]
    %v951 = vld [vmem:[%s5 + $0x8b8] sm:$0xff]
    %v952 = vld [vmem:[%s5 + $0x8c0] sm:$0xff]
    %v953 = vld [vmem:[%s5 + $0x8c8] sm:$0xff]
    %v954 = vld [vmem:[%s5 + $0x8d0] sm:$0xff]
    %v955 = vld [vmem:[%s5 + $0x8d8] sm:$0xff]
    %v956 = vld [vmem:[%s5 + $0x8e0] sm:$0xff]
    %v957 = vld [vmem:[%s5 + $0x8e8] sm:$0xff]
    %v958 = vld [vmem:[%s5 + $0x8f0] sm:$0xff]
    %v959 = vld [vmem:[%s5 + $0x8f8] sm:$0xff]
    %v960 = vld [vmem:[%s5 + $0x900] sm:$0xff]
    %v961 = vld [vmem:[%s5 + $0x908] sm:$0xff]
    %v962 = vld [vmem:[%s5 + $0x910] sm:$0xff]
    %v963 = vld [vmem:[%s5 + $0x918] sm:$0xff]
    %v964 = vld [vmem:[%s5 + $0x920] sm:$0xff]
    %v965 = vld [vmem:[%s5 + $0x928] sm:$0xff]
    %v966 = vld [vmem:[%s5 + $0x930] sm:$0xff]
    %v967 = vld [vmem:[%s5 + $0x938] sm:$0xff]
    %v968 = vld [vmem:[%s5 + $0x940] sm:$0xff]
    %v969 = vld [vmem:[%s5 + $0x948] sm:$0xff]
    %v970 = vld [vmem:[%s5 + $0x950] sm:$0xff]
    %v971 = vld [vmem:[%s5 + $0x958] sm:$0xff]
    %v972 = vld [vmem:[%s5 + $0x960] sm:$0xff]
    %v973 = vld [vmem:[%s5 + $0x968] sm:$0xff]
    %v974 = vld [vmem:[%s5 + $0x970] sm:$0xff]
    %v975 = vld [vmem:[%s5 + $0x978] sm:$0xff]
    %v976 = vld [vmem:[%s5 + $0x980] sm:$0xff]
    %v977 = vld [vmem:[%s5 + $0x988] sm:$0xff]
    %v978 = vld [vmem:[%s5 + $0x990] sm:$0xff]
    %v979 = vld [vmem:[%s5 + $0x998] sm:$0xff]
    %v980 = vld [vmem:[%s5 + $0x9a0] sm:$0xff]
    %v981 = vld [vmem:[%s5 + $0x9a8] sm:$0xff]
    %v982 = vld [vmem:[%s5 + $0x9b0] sm:$0xff]
    %v983 = vld [vmem:[%s5 + $0x9b8] sm:$0xff]
    %v984 = vld [vmem:[%s5 + $0x9c0] sm:$0xff]
    %v985 = vld [vmem:[%s5 + $0x9c8] sm:$0xff]
    %v986 = vld [vmem:[%s5 + $0x9d0] sm:$0xff]
    %v987 = vld [vmem:[%s5 + $0x9d8] sm:$0xff]
    %v988 = vld [vmem:[%s5 + $0x9e0] sm:$0xff]
    %v989 = vld [vmem:[%s5 + $0x9e8] sm:$0xff]
    %v990 = vld [vmem:[%s5 + $0x9f0] sm:$0xff]
    %v991 = vld [vmem:[%s5 + $0x9f8] sm:$0xff]
    %v992 = vld [vmem:[%s5 + $0xa00] sm:$0xff]
    %v993 = vld [vmem:[%s5 + $0xa08] sm:$0xff]
    %v994 = vld [vmem:[%s5 + $0xa10] sm:$0xff]
    %v995 = vld [vmem:[%s5 + $0xa18] sm:$0xff]
    %v996 = vld [vmem:[%s5 + $0xa20] sm:$0xff]
    %v997 = vld [vmem:[%s5 + $0xa28] sm:$0xff]
    %v998 = vld [vmem:[%s5 + $0xa30] sm:$0xff]
    %v999 = vld [vmem:[%s5 + $0xa38] sm:$0xff]
    %v1000 = vld [vmem:[%s5 + $0xa40] sm:$0xff]
    %v1001 = vld [vmem:[%s5 + $0xa48] sm:$0xff]
    %v1002 = vld [vmem:[%s5 + $0xa50] sm:$0xff]
    %v1003 = vld [vmem:[%s5 + $0xa58] sm:$0xff]
    %v1004 = vld [vmem:[%s5 + $0xa60] sm:$0xff]
    %v1005 = vld [vmem:[%s5 + $0xa68] sm:$0xff]
    %v1006 = vld [vmem:[%s5 + $0xa70] sm:$0xff]
    %v1007 = vld [vmem:[%s5 + $0xa78] sm:$0xff]
    %v1008 = vld [vmem:[%s5 + $0xa80] sm:$0xff]
    %v1009 = vld [vmem:[%s5 + $0xa88] sm:$0xff]
    %v1010 = vld [vmem:[%s5 + $0xa90] sm:$0xff]
    %v1011 = vld [vmem:[%s5 + $0xa98] sm:$0xff]
    %v1012 = vld [vmem:[%s5 + $0xaa0] sm:$0xff]
    %v1013 = vld [vmem:[%s5 + $0xaa8] sm:$0xff]
    %v1014 = vld [vmem:[%s5 + $0xab0] sm:$0xff]
    %v1015 = vld [vmem:[%s5 + $0xab8] sm:$0xff]
    %v1016 = vld [vmem:[%s5 + $0xac0] sm:$0xff]
    %v1017 = vld [vmem:[%s5 + $0xac8] sm:$0xff]
    %v1018 = vld [vmem:[%s5 + $0xad0] sm:$0xff]
    %v1019 = vld [vmem:[%s5 + $0xad8] sm:$0xff]
    %v1020 = vld [vmem:[%s5 + $0xae0] sm:$0xff]
    %v1021 = vld [vmem:[%s5 + $0xae8] sm:$0xff]
    %v1022 = vld [vmem:[%s5 + $0xaf0] sm:$0xff]
    %v1023 = vld [vmem:[%s5 + $0xaf8] sm:$0xff]
    %v1024 = vld [vmem:[%s5 + $0xb00] sm:$0xff]
    %v1025 = vld [vmem:[%s5 + $0xb08] sm:$0xff]
    %v1026 = vld [vmem:[%s5 + $0xb10] sm:$0xff]
    %v1027 = vld [vmem:[%s5 + $0xb18] sm:$0xff]
    %v1028 = vld [vmem:[%s5 + $0xb20] sm:$0xff]
    %v1029 = vld [vmem:[%s5 + $0xb28] sm:$0xff]
    %v1030 = vld [vmem:[%s5 + $0xb30] sm:$0xff]
    %v1031 = vld [vmem:[%s5 + $0xb38] sm:$0xff]
    %v1032 = vld [vmem:[%s5 + $0xb40] sm:$0xff]
    %v1033 = vld [vmem:[%s5 + $0xb48] sm:$0xff]
    %v1034 = vld [vmem:[%s5 + $0xb50] sm:$0xff]
    %v1035 = vld [vmem:[%s5 + $0xb58] sm:$0xff]
    %v1036 = vld [vmem:[%s5 + $0xb60] sm:$0xff]
    %v1037 = vld [vmem:[%s5 + $0xb68] sm:$0xff]
    %v1038 = vld [vmem:[%s5 + $0xb70] sm:$0xff]
    %v1039 = vld [vmem:[%s5 + $0xb78] sm:$0xff]
    %v1040 = vld [vmem:[%s5 + $0xb80] sm:$0xff]
    %v1041 = vld [vmem:[%s5 + $0xb88] sm:$0xff]
    %v1042 = vld [vmem:[%s5 + $0xb90] sm:$0xff]
    %v1043 = vld [vmem:[%s5 + $0xb98] sm:$0xff]
    %v1044 = vld [vmem:[%s5 + $0xba0] sm:$0xff]
    %v1045 = vld [vmem:[%s5 + $0xba8] sm:$0xff]
    %v1046 = vld [vmem:[%s5 + $0xbb0] sm:$0xff]
    %v1047 = vld [vmem:[%s5 + $0xbb8] sm:$0xff]
    %v1048 = vld [vmem:[%s5 + $0xbc0] sm:$0xff]
    %v1049 = vld [vmem:[%s5 + $0xbc8] sm:$0xff]
    %v1050 = vld [vmem:[%s5 + $0xbd0] sm:$0xff]
    %v1051 = vld [vmem:[%s5 + $0xbd8] sm:$0xff]
    %v1052 = vld [vmem:[%s5 + $0xbe0] sm:$0xff]
    %v1053 = vld [vmem:[%s5 + $0xbe8] sm:$0xff]
    %v1054 = vld [vmem:[%s5 + $0xbf0] sm:$0xff]
    %v1055 = vld [vmem:[%s5 + $0xbf8] sm:$0xff]
    %v1056 = vld [vmem:[%s5 + $0xc00] sm:$0xff]
    %v1057 = vld [vmem:[%s5 + $0xc08] sm:$0xff]
    %v1058 = vld [vmem:[%s5 + $0xc10] sm:$0xff]
    %v1059 = vld [vmem:[%s5 + $0xc18] sm:$0xff]
    %v1060 = vld [vmem:[%s5 + $0xc20] sm:$0xff]
    %v1061 = vld [vmem:[%s5 + $0xc28] sm:$0xff]
    %v1062 = vld [vmem:[%s5 + $0xc30] sm:$0xff]
    %v1063 = vld [vmem:[%s5 + $0xc38] sm:$0xff]
    %v1064 = vld [vmem:[%s5 + $0xc40] sm:$0xff]
    %v1065 = vld [vmem:[%s5 + $0xc48] sm:$0xff]
    %v1066 = vld [vmem:[%s5 + $0xc50] sm:$0xff]
    %v1067 = vld [vmem:[%s5 + $0xc58] sm:$0xff]
    %v1068 = vld [vmem:[%s5 + $0xc60] sm:$0xff]
    %v1069 = vld [vmem:[%s5 + $0xc68] sm:$0xff]
    %v1070 = vld [vmem:[%s5 + $0xc70] sm:$0xff]
    %v1071 = vld [vmem:[%s5 + $0xc78] sm:$0xff]
    %v1072 = vld [vmem:[%s5 + $0xc80] sm:$0xff]
    %v1073 = vld [vmem:[%s5 + $0xc88] sm:$0xff]
    %v1074 = vld [vmem:[%s5 + $0xc90] sm:$0xff]
    %v1075 = vld [vmem:[%s5 + $0xc98] sm:$0xff]
    %v1076 = vld [vmem:[%s5 + $0xca0] sm:$0xff]
    %v1077 = vld [vmem:[%s5 + $0xca8] sm:$0xff]
    %v1078 = vld [vmem:[%s5 + $0xcb0] sm:$0xff]
    %v1079 = vld [vmem:[%s5 + $0xcb8] sm:$0xff]
    %v1080 = vld [vmem:[%s5 + $0xcc0] sm:$0xff]
    %v1081 = vld [vmem:[%s5 + $0xcc8] sm:$0xff]
    %v1082 = vld [vmem:[%s5 + $0xcd0] sm:$0xff]
    %v1083 = vld [vmem:[%s5 + $0xcd8] sm:$0xff]
    %v1084 = vld [vmem:[%s5 + $0xce0] sm:$0xff]
    %v1085 = vld [vmem:[%s5 + $0xce8] sm:$0xff]
    %v1086 = vld [vmem:[%s5 + $0xcf0] sm:$0xff]
    %v1087 = vld [vmem:[%s5 + $0xcf8] sm:$0xff]
    %v1088 = vld [vmem:[%s5 + $0xd00] sm:$0xff]
    %v1089 = vld [vmem:[%s5 + $0xd08] sm:$0xff]
    %v1090 = vld [vmem:[%s5 + $0xd10] sm:$0xff]
    %v1091 = vld [vmem:[%s5 + $0xd18] sm:$0xff]
    %v1092 = vld [vmem:[%s5 + $0xd20] sm:$0xff]
    %v1093 = vld [vmem:[%s5 + $0xd28] sm:$0xff]
    %v1094 = vld [vmem:[%s5 + $0xd30] sm:$0xff]
    %v1095 = vld [vmem:[%s5 + $0xd38] sm:$0xff]
    %v1096 = vld [vmem:[%s5 + $0xd40] sm:$0xff]
    %v1097 = vld [vmem:[%s5 + $0xd48] sm:$0xff]
    %v1098 = vld [vmem:[%s5 + $0xd50] sm:$0xff]
    %v1099 = vld [vmem:[%s5 + $0xd58] sm:$0xff]
    %v1100 = vld [vmem:[%s5 + $0xd60] sm:$0xff]
    %v1101 = vld [vmem:[%s5 + $0xd68] sm:$0xff]
    %v1102 = vld [vmem:[%s5 + $0xd70] sm:$0xff]
    %v1103 = vld [vmem:[%s5 + $0xd78] sm:$0xff]
    %v1104 = vld [vmem:[%s5 + $0xd80] sm:$0xff]
    %v1105 = vld [vmem:[%s5 + $0xd88] sm:$0xff]
    %v1106 = vld [vmem:[%s5 + $0xd90] sm:$0xff]
    %v1107 = vld [vmem:[%s5 + $0xd98] sm:$0xff]
    %v1108 = vld [vmem:[%s5 + $0xda0] sm:$0xff]
    %v1109 = vld [vmem:[%s5 + $0xda8] sm:$0xff]
    %v1110 = vld [vmem:[%s5 + $0xdb0] sm:$0xff]
    %v1111 = vld [vmem:[%s5 + $0xdb8] sm:$0xff]
    %v1112 = vld [vmem:[%s5 + $0xdc0] sm:$0xff]
    %v1113 = vld [vmem:[%s5 + $0xdc8] sm:$0xff]
    %v1114 = vld [vmem:[%s5 + $0xdd0] sm:$0xff]
    %v1115 = vld [vmem:[%s5 + $0xdd8] sm:$0xff]
    %v1116 = vld [vmem:[%s5 + $0xde0] sm:$0xff]
    %v1117 = vld [vmem:[%s5 + $0xde8] sm:$0xff]
    %v1118 = vld [vmem:[%s5 + $0xdf0] sm:$0xff]
    %v1119 = vld [vmem:[%s5 + $0xdf8] sm:$0xff]
    %v1120 = vld [vmem:[%s5 + $0xe00] sm:$0xff]
    %v1121 = vld [vmem:[%s5 + $0xe08] sm:$0xff]
    %v1122 = vld [vmem:[%s5 + $0xe10] sm:$0xff]
    %v1123 = vld [vmem:[%s5 + $0xe18] sm:$0xff]
    %v1124 = vld [vmem:[%s5 + $0xe20] sm:$0xff]
    %v1125 = vld [vmem:[%s5 + $0xe28] sm:$0xff]
    %v1126 = vld [vmem:[%s5 + $0xe30] sm:$0xff]
    %v1127 = vld [vmem:[%s5 + $0xe38] sm:$0xff]
    %v1128 = vld [vmem:[%s5 + $0xe40] sm:$0xff]
    %v1129 = vld [vmem:[%s5 + $0xe48] sm:$0xff]
    %v1130 = vld [vmem:[%s5 + $0xe50] sm:$0xff]
    %v1131 = vld [vmem:[%s5 + $0xe58] sm:$0xff]
    %v1132 = vld [vmem:[%s5 + $0xe60] sm:$0xff]
    %v1133 = vld [vmem:[%s5 + $0xe68] sm:$0xff]
    %v1134 = vld [vmem:[%s5 + $0xe70] sm:$0xff]
    %v1135 = vld [vmem:[%s5 + $0xe78] sm:$0xff]
    %v1136 = vld [vmem:[%s5 + $0xe80] sm:$0xff]
    %v1137 = vld [vmem:[%s5 + $0xe88] sm:$0xff]
    %v1138 = vld [vmem:[%s5 + $0xe90] sm:$0xff]
    %v1139 = vld [vmem:[%s5 + $0xe98] sm:$0xff]
    %v1140 = vld [vmem:[%s5 + $0xea0] sm:$0xff]
    %v1141 = vld [vmem:[%s5 + $0xea8] sm:$0xff]
    %v1142 = vld [vmem:[%s5 + $0xeb0] sm:$0xff]
    %v1143 = vld [vmem:[%s5 + $0xeb8] sm:$0xff]
    %v1144 = vld [vmem:[%s5 + $0xec0] sm:$0xff]
    %v1145 = vld [vmem:[%s5 + $0xec8] sm:$0xff]
    %v1146 = vld [vmem:[%s5 + $0xed0] sm:$0xff]
    %v1147 = vld [vmem:[%s5 + $0xed8] sm:$0xff]
    %v1148 = vld [vmem:[%s5 + $0xee0] sm:$0xff]
    %v1149 = vld [vmem:[%s5 + $0xee8] sm:$0xff]
    %v1150 = vld [vmem:[%s5 + $0xef0] sm:$0xff]
    %v1151 = vld [vmem:[%s5 + $0xef8] sm:$0xff]
    %v1152 = vld [vmem:[%s5 + $0xf00] sm:$0xff]
    %v1153 = vld [vmem:[%s5 + $0xf08] sm:$0xff]
    %v1154 = vld [vmem:[%s5 + $0xf10] sm:$0xff]
    %v1155 = vld [vmem:[%s5 + $0xf18] sm:$0xff]
    %v1156 = vld [vmem:[%s5 + $0xf20] sm:$0xff]
    %v1157 = vld [vmem:[%s5 + $0xf28] sm:$0xff]
    %v1158 = vld [vmem:[%s5 + $0xf30] sm:$0xff]
    %v1159 = vld [vmem:[%s5 + $0xf38] sm:$0xff]
    %v1160 = vld [vmem:[%s5 + $0xf40] sm:$0xff]
    %v1161 = vld [vmem:[%s5 + $0xf48] sm:$0xff]
    %v1162 = vld [vmem:[%s5 + $0xf50] sm:$0xff]
    %v1163 = vld [vmem:[%s5 + $0xf58] sm:$0xff]
    %v1164 = vld [vmem:[%s5 + $0xf60] sm:$0xff]
    %v1165 = vld [vmem:[%s5 + $0xf68] sm:$0xff]
    %v1166 = vld [vmem:[%s5 + $0xf70] sm:$0xff]
    %v1167 = vld [vmem:[%s5 + $0xf78] sm:$0xff]
    %v1168 = vld [vmem:[%s5 + $0xf80] sm:$0xff]
    %v1169 = vld [vmem:[%s5 + $0xf88] sm:$0xff]
    %v1170 = vld [vmem:[%s5 + $0xf90] sm:$0xff]
    %v1171 = vld [vmem:[%s5 + $0xf98] sm:$0xff]
    %v1172 = vld [vmem:[%s5 + $0xfa0] sm:$0xff]
    %v1173 = vld [vmem:[%s5 + $0xfa8] sm:$0xff]
    %v1174 = vld [vmem:[%s5 + $0xfb0] sm:$0xff]
    %v1175 = vld [vmem:[%s5 + $0xfb8] sm:$0xff]
    %v1176 = vld [vmem:[%s5 + $0xfc0] sm:$0xff]
    %v1177 = vld [vmem:[%s5 + $0xfc8] sm:$0xff]
    %v1178 = vld [vmem:[%s5 + $0xfd0] sm:$0xff]
    %v1179 = vld [vmem:[%s5 + $0xfd8] sm:$0xff]
    %v1180 = vld [vmem:[%s5 + $0xfe0] sm:$0xff]
    %v1181 = vld [vmem:[%s5 + $0xfe8] sm:$0xff]
    %v1182 = vld [vmem:[%s5 + $0xff0] sm:$0xff]
    %v1183 = vld [vmem:[%s5 + $0xff8] sm:$0xff]
    %v1184 = vld [vmem:[%s5 + $0x1000] sm:$0xff]
    %v1185 = vld [vmem:[%s5 + $0x1008] sm:$0xff]
    %v1186 = vld [vmem:[%s5 + $0x1010] sm:$0xff]
    %v1187 = vld [vmem:[%s5 + $0x1018] sm:$0xff]
    %v1188 = vld [vmem:[%s5 + $0x1020] sm:$0xff]
    %v1189 = vld [vmem:[%s5 + $0x1028] sm:$0xff]
    %v1190 = vld [vmem:[%s5 + $0x1030] sm:$0xff]
    %v1191 = vld [vmem:[%s5 + $0x1038] sm:$0xff]
    %v1192 = vld [vmem:[%s5 + $0x1040] sm:$0xff]
    %v1193 = vld [vmem:[%s5 + $0x1048] sm:$0xff]
    %v1194 = vld [vmem:[%s5 + $0x1050] sm:$0xff]
    %v1195 = vld [vmem:[%s5 + $0x1058] sm:$0xff]
    %v1196 = vld [vmem:[%s5 + $0x1060] sm:$0xff]
    %v1197 = vld [vmem:[%s5 + $0x1068] sm:$0xff]
    %v1198 = vld [vmem:[%s5 + $0x1070] sm:$0xff]
    %v1199 = vld [vmem:[%s5 + $0x1078] sm:$0xff]
    %v1200 = vld [vmem:[%s5 + $0x1080] sm:$0xff]
    %v1201 = vld [vmem:[%s5 + $0x1088] sm:$0xff]
    %v1202 = vld [vmem:[%s5 + $0x1090] sm:$0xff]
    %v1203 = vld [vmem:[%s5 + $0x1098] sm:$0xff]
    %v1204 = vld [vmem:[%s5 + $0x10a0] sm:$0xff]
    %v1205 = vld [vmem:[%s5 + $0x10a8] sm:$0xff]
    %v1206 = vld [vmem:[%s5 + $0x10b0] sm:$0xff]
    %v1207 = vld [vmem:[%s5 + $0x10b8] sm:$0xff]
    %v1208 = vld [vmem:[%s5 + $0x10c0] sm:$0xff]
    %v1209 = vld [vmem:[%s5 + $0x10c8] sm:$0xff]
    %v1210 = vld [vmem:[%s5 + $0x10d0] sm:$0xff]
    %v1211 = vld [vmem:[%s5 + $0x10d8] sm:$0xff]
    %v1212 = vld [vmem:[%s5 + $0x10e0] sm:$0xff]
    %v1213 = vld [vmem:[%s5 + $0x10e8] sm:$0xff]
    %v1214 = vld [vmem:[%s5 + $0x10f0] sm:$0xff]
    %v1215 = vld [vmem:[%s5 + $0x10f8] sm:$0xff]
    %v1216 = vld [vmem:[%s5 + $0x1100] sm:$0xff]
    %v1217 = vld [vmem:[%s5 + $0x1108] sm:$0xff]
    %v1218 = vld [vmem:[%s5 + $0x1110] sm:$0xff]
    %v1219 = vld [vmem:[%s5 + $0x1118] sm:$0xff]
    %v1220 = vld [vmem:[%s5 + $0x1120] sm:$0xff]
    %v1221 = vld [vmem:[%s5 + $0x1128] sm:$0xff]
    %v1222 = vld [vmem:[%s5 + $0x1130] sm:$0xff]
    %v1223 = vld [vmem:[%s5 + $0x1138] sm:$0xff]
    %v1224 = vld [vmem:[%s5 + $0x1140] sm:$0xff]
    %v1225 = vld [vmem:[%s5 + $0x1148] sm:$0xff]
    %v1226 = vld [vmem:[%s5 + $0x1150] sm:$0xff]
    %v1227 = vld [vmem:[%s5 + $0x1158] sm:$0xff]
    %v1228 = vld [vmem:[%s5 + $0x1160] sm:$0xff]
    %v1229 = vld [vmem:[%s5 + $0x1168] sm:$0xff]
    %v1230 = vld [vmem:[%s5 + $0x1170] sm:$0xff]
    %v1231 = vld [vmem:[%s5 + $0x1178] sm:$0xff]
    %v1232 = vld [vmem:[%s6] sm:$0x7f]
    %v1234 = vperm.slane %v1232, 0
    %v1235 = vperm.slane %v1232, 1
    %v1236 = vperm.slane %v1232, 2
    %v1237 = vperm.slane %v1232, 3
    %v1238 = vperm.slane %v1232, 4
    %v1239 = vperm.slane %v1232, 5
    %v1240 = vperm.slane %v1232, 6
    %1248 = vmatpush.msra.mxu0 %v777
    %1249 = vmatpush.msra.mxu0 %v770
    %1250 = vmatpush.msra.mxu0 %v763
    %1251 = vmatpush.msra.mxu0 %v756
    %1252 = vmatpush.msra.mxu0 %v749
    %1253 = vmatpush.msra.mxu0 %v742
    %1254 = vmatpush.msra.mxu0 %v735
    %1255 = vmatpush.msra.mxu0 %v728
    %1256 = vmatpush.msra.mxu0 %v721
    %1257 = vmatpush.msra.mxu0 %v714
    %1258 = vmatpush.msra.mxu0 %v707
    %1259 = vmatpush.msra.mxu0 %v700
    %1260 = vmatpush.msra.mxu0 %v693
    %1261 = vmatpush.msra.mxu0 %v686
    %1262 = vmatpush.msra.mxu0 %v679
    %1263 = vmatpush.msra.mxu0 %v672
    %1264 = vmatmul.f32.gmra.mxu0 %v667
    %v1265 = vpop.f32.mrf.mxu0
    %v1266 = vadd.f32 %v1234, %v1265
    %1267 = vdwg.mxu0
    %1268 = vmatpush.msra.mxu0 %v889
    %1269 = vmatpush.msra.mxu0 %v882
    %1270 = vmatpush.msra.mxu0 %v875
    %1271 = vmatpush.msra.mxu0 %v868
    %1272 = vmatpush.msra.mxu0 %v861
    %1273 = vmatpush.msra.mxu0 %v854
    %1274 = vmatpush.msra.mxu0 %v847
    %1275 = vmatpush.msra.mxu0 %v840
    %1276 = vmatpush.msra.mxu0 %v833
    %1277 = vmatpush.msra.mxu0 %v826
    %1278 = vmatpush.msra.mxu0 %v819
    %1279 = vmatpush.msra.mxu0 %v812
    %1280 = vmatpush.msra.mxu0 %v805
    %1281 = vmatpush.msra.mxu0 %v798
    %1282 = vmatpush.msra.mxu0 %v791
    %1283 = vmatpush.msra.mxu0 %v784
    %1284 = vmatmul.f32.gmra.mxu0 %v668
    %v1285 = vpop.f32.mrf.mxu0
    %v1286 = vadd.f32 %v1266, %v1285
    %1287 = vdwg.mxu0
    %1288 = vmatpush.msra.mxu0 %v1001
    %1289 = vmatpush.msra.mxu0 %v994
    %1290 = vmatpush.msra.mxu0 %v987
    %1291 = vmatpush.msra.mxu0 %v980
    %1292 = vmatpush.msra.mxu0 %v973
    %1293 = vmatpush.msra.mxu0 %v966
    %1294 = vmatpush.msra.mxu0 %v959
    %1295 = vmatpush.msra.mxu0 %v952
    %1296 = vmatpush.msra.mxu0 %v945
    %1297 = vmatpush.msra.mxu0 %v938
    %1298 = vmatpush.msra.mxu0 %v931
    %1299 = vmatpush.msra.mxu0 %v924
    %1300 = vmatpush.msra.mxu0 %v917
    %1301 = vmatpush.msra.mxu0 %v910
    %1302 = vmatpush.msra.mxu0 %v903
    %1303 = vmatpush.msra.mxu0 %v896
    %1304 = vmatmul.f32.gmra.mxu0 %v669
    %v1305 = vpop.f32.mrf.mxu0
    %v1306 = vadd.f32 %v1286, %v1305
    %1307 = vdwg.mxu0
    %1308 = vmatpush.msra.mxu0 %v1113
    %1309 = vmatpush.msra.mxu0 %v1106
    %1310 = vmatpush.msra.mxu0 %v1099
    %1311 = vmatpush.msra.mxu0 %v1092
    %1312 = vmatpush.msra.mxu0 %v1085
    %1313 = vmatpush.msra.mxu0 %v1078
    %1314 = vmatpush.msra.mxu0 %v1071
    %1315 = vmatpush.msra.mxu0 %v1064
    %1316 = vmatpush.msra.mxu0 %v1057
    %1317 = vmatpush.msra.mxu0 %v1050
    %1318 = vmatpush.msra.mxu0 %v1043
    %1319 = vmatpush.msra.mxu0 %v1036
    %1320 = vmatpush.msra.mxu0 %v1029
    %1321 = vmatpush.msra.mxu0 %v1022
    %1322 = vmatpush.msra.mxu0 %v1015
    %1323 = vmatpush.msra.mxu0 %v1008
    %1324 = vmatmul.f32.gmra.mxu0 %v670
    %v1325 = vpop.f32.mrf.mxu0
    %v1326 = vadd.f32 %v1306, %v1325
    %1327 = vdwg.mxu0
    %1328 = vmatpush.msra.mxu0 %v1225
    %1329 = vmatpush.msra.mxu0 %v1218
    %1330 = vmatpush.msra.mxu0 %v1211
    %1331 = vmatpush.msra.mxu0 %v1204
    %1332 = vmatpush.msra.mxu0 %v1197
    %1333 = vmatpush.msra.mxu0 %v1190
    %1334 = vmatpush.msra.mxu0 %v1183
    %1335 = vmatpush.msra.mxu0 %v1176
    %1336 = vmatpush.msra.mxu0 %v1169
    %1337 = vmatpush.msra.mxu0 %v1162
    %1338 = vmatpush.msra.mxu0 %v1155
    %1339 = vmatpush.msra.mxu0 %v1148
    %1340 = vmatpush.msra.mxu0 %v1141
    %1341 = vmatpush.msra.mxu0 %v1134
    %1342 = vmatpush.msra.mxu0 %v1127
    %1343 = vmatpush.msra.mxu0 %v1120
    %1344 = vmatmul.f32.gmra.mxu0 %v671
    %v1345 = vpop.f32.mrf.mxu0
    %v1346 = vadd.f32 %v1326, %v1345
    %1347 = vdwg.mxu0
    %1348 = vmatpush.msra.mxu0 %v778
    %1349 = vmatpush.msra.mxu0 %v771
    %1350 = vmatpush.msra.mxu0 %v764
    %1351 = vmatpush.msra.mxu0 %v757
    %1352 = vmatpush.msra.mxu0 %v750
    %1353 = vmatpush.msra.mxu0 %v743
    %1354 = vmatpush.msra.mxu0 %v736
    %1355 = vmatpush.msra.mxu0 %v729
    %1356 = vmatpush.msra.mxu0 %v722
    %1357 = vmatpush.msra.mxu0 %v715
    %1358 = vmatpush.msra.mxu0 %v708
    %1359 = vmatpush.msra.mxu0 %v701
    %1360 = vmatpush.msra.mxu0 %v694
    %1361 = vmatpush.msra.mxu0 %v687
    %1362 = vmatpush.msra.mxu0 %v680
    %1363 = vmatpush.msra.mxu0 %v673
    %1364 = vmatmul.f32.gmra.mxu0 %v667
    %v1365 = vpop.f32.mrf.mxu0
    %v1366 = vadd.f32 %v1235, %v1365
    %1367 = vdwg.mxu0
    %1368 = vmatpush.msra.mxu0 %v890
    %1369 = vmatpush.msra.mxu0 %v883
    %1370 = vmatpush.msra.mxu0 %v876
    %1371 = vmatpush.msra.mxu0 %v869
    %1372 = vmatpush.msra.mxu0 %v862
    %1373 = vmatpush.msra.mxu0 %v855
    %1374 = vmatpush.msra.mxu0 %v848
    %1375 = vmatpush.msra.mxu0 %v841
    %1376 = vmatpush.msra.mxu0 %v834
    %1377 = vmatpush.msra.mxu0 %v827
    %1378 = vmatpush.msra.mxu0 %v820
    %1379 = vmatpush.msra.mxu0 %v813
    %1380 = vmatpush.msra.mxu0 %v806
    %1381 = vmatpush.msra.mxu0 %v799
    %1382 = vmatpush.msra.mxu0 %v792
    %1383 = vmatpush.msra.mxu0 %v785
    %1384 = vmatmul.f32.gmra.mxu0 %v668
    %v1385 = vpop.f32.mrf.mxu0
    %v1386 = vadd.f32 %v1366, %v1385
    %1387 = vdwg.mxu0
    %1388 = vmatpush.msra.mxu0 %v1002
    %1389 = vmatpush.msra.mxu0 %v995
    %1390 = vmatpush.msra.mxu0 %v988
    %1391 = vmatpush.msra.mxu0 %v981
    %1392 = vmatpush.msra.mxu0 %v974
    %1393 = vmatpush.msra.mxu0 %v967
    %1394 = vmatpush.msra.mxu0 %v960
    %1395 = vmatpush.msra.mxu0 %v953
    %1396 = vmatpush.msra.mxu0 %v946
    %1397 = vmatpush.msra.mxu0 %v939
    %1398 = vmatpush.msra.mxu0 %v932
    %1399 = vmatpush.msra.mxu0 %v925
    %1400 = vmatpush.msra.mxu0 %v918
    %1401 = vmatpush.msra.mxu0 %v911
    %1402 = vmatpush.msra.mxu0 %v904
    %1403 = vmatpush.msra.mxu0 %v897
    %1404 = vmatmul.f32.gmra.mxu0 %v669
    %v1405 = vpop.f32.mrf.mxu0
    %v1406 = vadd.f32 %v1386, %v1405
    %1407 = vdwg.mxu0
    %1408 = vmatpush.msra.mxu0 %v1114
    %1409 = vmatpush.msra.mxu0 %v1107
    %1410 = vmatpush.msra.mxu0 %v1100
    %1411 = vmatpush.msra.mxu0 %v1093
    %1412 = vmatpush.msra.mxu0 %v1086
    %1413 = vmatpush.msra.mxu0 %v1079
    %1414 = vmatpush.msra.mxu0 %v1072
    %1415 = vmatpush.msra.mxu0 %v1065
    %1416 = vmatpush.msra.mxu0 %v1058
    %1417 = vmatpush.msra.mxu0 %v1051
    %1418 = vmatpush.msra.mxu0 %v1044
    %1419 = vmatpush.msra.mxu0 %v1037
    %1420 = vmatpush.msra.mxu0 %v1030
    %1421 = vmatpush.msra.mxu0 %v1023
    %1422 = vmatpush.msra.mxu0 %v1016
    %1423 = vmatpush.msra.mxu0 %v1009
    %1424 = vmatmul.f32.gmra.mxu0 %v670
    %v1425 = vpop.f32.mrf.mxu0
    %v1426 = vadd.f32 %v1406, %v1425
    %1427 = vdwg.mxu0
    %1428 = vmatpush.msra.mxu0 %v1226
    %1429 = vmatpush.msra.mxu0 %v1219
    %1430 = vmatpush.msra.mxu0 %v1212
    %1431 = vmatpush.msra.mxu0 %v1205
    %1432 = vmatpush.msra.mxu0 %v1198
    %1433 = vmatpush.msra.mxu0 %v1191
    %1434 = vmatpush.msra.mxu0 %v1184
    %1435 = vmatpush.msra.mxu0 %v1177
    %1436 = vmatpush.msra.mxu0 %v1170
    %1437 = vmatpush.msra.mxu0 %v1163
    %1438 = vmatpush.msra.mxu0 %v1156
    %1439 = vmatpush.msra.mxu0 %v1149
    %1440 = vmatpush.msra.mxu0 %v1142
    %1441 = vmatpush.msra.mxu0 %v1135
    %1442 = vmatpush.msra.mxu0 %v1128
    %1443 = vmatpush.msra.mxu0 %v1121
    %1444 = vmatmul.f32.gmra.mxu0 %v671
    %v1445 = vpop.f32.mrf.mxu0
    %v1446 = vadd.f32 %v1426, %v1445
    %1447 = vdwg.mxu0
    %1448 = vmatpush.msra.mxu0 %v779
    %1449 = vmatpush.msra.mxu0 %v772
    %1450 = vmatpush.msra.mxu0 %v765
    %1451 = vmatpush.msra.mxu0 %v758
    %1452 = vmatpush.msra.mxu0 %v751
    %1453 = vmatpush.msra.mxu0 %v744
    %1454 = vmatpush.msra.mxu0 %v737
    %1455 = vmatpush.msra.mxu0 %v730
    %1456 = vmatpush.msra.mxu0 %v723
    %1457 = vmatpush.msra.mxu0 %v716
    %1458 = vmatpush.msra.mxu0 %v709
    %1459 = vmatpush.msra.mxu0 %v702
    %1460 = vmatpush.msra.mxu0 %v695
    %1461 = vmatpush.msra.mxu0 %v688
    %1462 = vmatpush.msra.mxu0 %v681
    %1463 = vmatpush.msra.mxu0 %v674
    %1464 = vmatmul.f32.gmra.mxu0 %v667
    %v1465 = vpop.f32.mrf.mxu0
    %v1466 = vadd.f32 %v1236, %v1465
    %1467 = vdwg.mxu0
    %1468 = vmatpush.msra.mxu0 %v891
    %1469 = vmatpush.msra.mxu0 %v884
    %1470 = vmatpush.msra.mxu0 %v877
    %1471 = vmatpush.msra.mxu0 %v870
    %1472 = vmatpush.msra.mxu0 %v863
    %1473 = vmatpush.msra.mxu0 %v856
    %1474 = vmatpush.msra.mxu0 %v849
    %1475 = vmatpush.msra.mxu0 %v842
    %1476 = vmatpush.msra.mxu0 %v835
    %1477 = vmatpush.msra.mxu0 %v828
    %1478 = vmatpush.msra.mxu0 %v821
    %1479 = vmatpush.msra.mxu0 %v814
    %1480 = vmatpush.msra.mxu0 %v807
    %1481 = vmatpush.msra.mxu0 %v800
    %1482 = vmatpush.msra.mxu0 %v793
    %1483 = vmatpush.msra.mxu0 %v786
    %1484 = vmatmul.f32.gmra.mxu0 %v668
    %v1485 = vpop.f32.mrf.mxu0
    %v1486 = vadd.f32 %v1466, %v1485
    %1487 = vdwg.mxu0
    %1488 = vmatpush.msra.mxu0 %v1003
    %1489 = vmatpush.msra.mxu0 %v996
    %1490 = vmatpush.msra.mxu0 %v989
    %1491 = vmatpush.msra.mxu0 %v982
    %1492 = vmatpush.msra.mxu0 %v975
    %1493 = vmatpush.msra.mxu0 %v968
    %1494 = vmatpush.msra.mxu0 %v961
    %1495 = vmatpush.msra.mxu0 %v954
    %1496 = vmatpush.msra.mxu0 %v947
    %1497 = vmatpush.msra.mxu0 %v940
    %1498 = vmatpush.msra.mxu0 %v933
    %1499 = vmatpush.msra.mxu0 %v926
    %1500 = vmatpush.msra.mxu0 %v919
    %1501 = vmatpush.msra.mxu0 %v912
    %1502 = vmatpush.msra.mxu0 %v905
    %1503 = vmatpush.msra.mxu0 %v898
    %1504 = vmatmul.f32.gmra.mxu0 %v669
    %v1505 = vpop.f32.mrf.mxu0
    %v1506 = vadd.f32 %v1486, %v1505
    %1507 = vdwg.mxu0
    %1508 = vmatpush.msra.mxu0 %v1115
    %1509 = vmatpush.msra.mxu0 %v1108
    %1510 = vmatpush.msra.mxu0 %v1101
    %1511 = vmatpush.msra.mxu0 %v1094
    %1512 = vmatpush.msra.mxu0 %v1087
    %1513 = vmatpush.msra.mxu0 %v1080
    %1514 = vmatpush.msra.mxu0 %v1073
    %1515 = vmatpush.msra.mxu0 %v1066
    %1516 = vmatpush.msra.mxu0 %v1059
    %1517 = vmatpush.msra.mxu0 %v1052
    %1518 = vmatpush.msra.mxu0 %v1045
    %1519 = vmatpush.msra.mxu0 %v1038
    %1520 = vmatpush.msra.mxu0 %v1031
    %1521 = vmatpush.msra.mxu0 %v1024
    %1522 = vmatpush.msra.mxu0 %v1017
    %1523 = vmatpush.msra.mxu0 %v1010
    %1524 = vmatmul.f32.gmra.mxu0 %v670
    %v1525 = vpop.f32.mrf.mxu0
    %v1526 = vadd.f32 %v1506, %v1525
    %1527 = vdwg.mxu0
    %1528 = vmatpush.msra.mxu0 %v1227
    %1529 = vmatpush.msra.mxu0 %v1220
    %1530 = vmatpush.msra.mxu0 %v1213
    %1531 = vmatpush.msra.mxu0 %v1206
    %1532 = vmatpush.msra.mxu0 %v1199
    %1533 = vmatpush.msra.mxu0 %v1192
    %1534 = vmatpush.msra.mxu0 %v1185
    %1535 = vmatpush.msra.mxu0 %v1178
    %1536 = vmatpush.msra.mxu0 %v1171
    %1537 = vmatpush.msra.mxu0 %v1164
    %1538 = vmatpush.msra.mxu0 %v1157
    %1539 = vmatpush.msra.mxu0 %v1150
    %1540 = vmatpush.msra.mxu0 %v1143
    %1541 = vmatpush.msra.mxu0 %v1136
    %1542 = vmatpush.msra.mxu0 %v1129
    %1543 = vmatpush.msra.mxu0 %v1122
    %1544 = vmatmul.f32.gmra.mxu0 %v671
    %v1545 = vpop.f32.mrf.mxu0
    %v1546 = vadd.f32 %v1526, %v1545
    %1547 = vdwg.mxu0
    %1548 = vmatpush.msra.mxu0 %v780
    %1549 = vmatpush.msra.mxu0 %v773
    %1550 = vmatpush.msra.mxu0 %v766
    %1551 = vmatpush.msra.mxu0 %v759
    %1552 = vmatpush.msra.mxu0 %v752
    %1553 = vmatpush.msra.mxu0 %v745
    %1554 = vmatpush.msra.mxu0 %v738
    %1555 = vmatpush.msra.mxu0 %v731
    %1556 = vmatpush.msra.mxu0 %v724
    %1557 = vmatpush.msra.mxu0 %v717
    %1558 = vmatpush.msra.mxu0 %v710
    %1559 = vmatpush.msra.mxu0 %v703
    %1560 = vmatpush.msra.mxu0 %v696
    %1561 = vmatpush.msra.mxu0 %v689
    %1562 = vmatpush.msra.mxu0 %v682
    %1563 = vmatpush.msra.mxu0 %v675
    %1564 = vmatmul.f32.gmra.mxu0 %v667
    %v1565 = vpop.f32.mrf.mxu0
    %v1566 = vadd.f32 %v1237, %v1565
    %1567 = vdwg.mxu0
    %1568 = vmatpush.msra.mxu0 %v892
    %1569 = vmatpush.msra.mxu0 %v885
    %1570 = vmatpush.msra.mxu0 %v878
    %1571 = vmatpush.msra.mxu0 %v871
    %1572 = vmatpush.msra.mxu0 %v864
    %1573 = vmatpush.msra.mxu0 %v857
    %1574 = vmatpush.msra.mxu0 %v850
    %1575 = vmatpush.msra.mxu0 %v843
    %1576 = vmatpush.msra.mxu0 %v836
    %1577 = vmatpush.msra.mxu0 %v829
    %1578 = vmatpush.msra.mxu0 %v822
    %1579 = vmatpush.msra.mxu0 %v815
    %1580 = vmatpush.msra.mxu0 %v808
    %1581 = vmatpush.msra.mxu0 %v801
    %1582 = vmatpush.msra.mxu0 %v794
    %1583 = vmatpush.msra.mxu0 %v787
    %1584 = vmatmul.f32.gmra.mxu0 %v668
    %v1585 = vpop.f32.mrf.mxu0
    %v1586 = vadd.f32 %v1566, %v1585
    %1587 = vdwg.mxu0
    %1588 = vmatpush.msra.mxu0 %v1004
    %1589 = vmatpush.msra.mxu0 %v997
    %1590 = vmatpush.msra.mxu0 %v990
    %1591 = vmatpush.msra.mxu0 %v983
    %1592 = vmatpush.msra.mxu0 %v976
    %1593 = vmatpush.msra.mxu0 %v969
    %1594 = vmatpush.msra.mxu0 %v962
    %1595 = vmatpush.msra.mxu0 %v955
    %1596 = vmatpush.msra.mxu0 %v948
    %1597 = vmatpush.msra.mxu0 %v941
    %1598 = vmatpush.msra.mxu0 %v934
    %1599 = vmatpush.msra.mxu0 %v927
    %1600 = vmatpush.msra.mxu0 %v920
    %1601 = vmatpush.msra.mxu0 %v913
    %1602 = vmatpush.msra.mxu0 %v906
    %1603 = vmatpush.msra.mxu0 %v899
    %1604 = vmatmul.f32.gmra.mxu0 %v669
    %v1605 = vpop.f32.mrf.mxu0
    %v1606 = vadd.f32 %v1586, %v1605
    %1607 = vdwg.mxu0
    %1608 = vmatpush.msra.mxu0 %v1116
    %1609 = vmatpush.msra.mxu0 %v1109
    %1610 = vmatpush.msra.mxu0 %v1102
    %1611 = vmatpush.msra.mxu0 %v1095
    %1612 = vmatpush.msra.mxu0 %v1088
    %1613 = vmatpush.msra.mxu0 %v1081
    %1614 = vmatpush.msra.mxu0 %v1074
    %1615 = vmatpush.msra.mxu0 %v1067
    %1616 = vmatpush.msra.mxu0 %v1060
    %1617 = vmatpush.msra.mxu0 %v1053
    %1618 = vmatpush.msra.mxu0 %v1046
    %1619 = vmatpush.msra.mxu0 %v1039
    %1620 = vmatpush.msra.mxu0 %v1032
    %1621 = vmatpush.msra.mxu0 %v1025
    %1622 = vmatpush.msra.mxu0 %v1018
    %1623 = vmatpush.msra.mxu0 %v1011
    %1624 = vmatmul.f32.gmra.mxu0 %v670
    %v1625 = vpop.f32.mrf.mxu0
    %v1626 = vadd.f32 %v1606, %v1625
    %1627 = vdwg.mxu0
    %1628 = vmatpush.msra.mxu0 %v1228
    %1629 = vmatpush.msra.mxu0 %v1221
    %1630 = vmatpush.msra.mxu0 %v1214
    %1631 = vmatpush.msra.mxu0 %v1207
    %1632 = vmatpush.msra.mxu0 %v1200
    %1633 = vmatpush.msra.mxu0 %v1193
    %1634 = vmatpush.msra.mxu0 %v1186
    %1635 = vmatpush.msra.mxu0 %v1179
    %1636 = vmatpush.msra.mxu0 %v1172
    %1637 = vmatpush.msra.mxu0 %v1165
    %1638 = vmatpush.msra.mxu0 %v1158
    %1639 = vmatpush.msra.mxu0 %v1151
    %1640 = vmatpush.msra.mxu0 %v1144
    %1641 = vmatpush.msra.mxu0 %v1137
    %1642 = vmatpush.msra.mxu0 %v1130
    %1643 = vmatpush.msra.mxu0 %v1123
    %1644 = vmatmul.f32.gmra.mxu0 %v671
    %v1645 = vpop.f32.mrf.mxu0
    %v1646 = vadd.f32 %v1626, %v1645
    %1647 = vdwg.mxu0
    %1648 = vmatpush.msra.mxu0 %v781
    %1649 = vmatpush.msra.mxu0 %v774
    %1650 = vmatpush.msra.mxu0 %v767
    %1651 = vmatpush.msra.mxu0 %v760
    %1652 = vmatpush.msra.mxu0 %v753
    %1653 = vmatpush.msra.mxu0 %v746
    %1654 = vmatpush.msra.mxu0 %v739
    %1655 = vmatpush.msra.mxu0 %v732
    %1656 = vmatpush.msra.mxu0 %v725
    %1657 = vmatpush.msra.mxu0 %v718
    %1658 = vmatpush.msra.mxu0 %v711
    %1659 = vmatpush.msra.mxu0 %v704
    %1660 = vmatpush.msra.mxu0 %v697
    %1661 = vmatpush.msra.mxu0 %v690
    %1662 = vmatpush.msra.mxu0 %v683
    %1663 = vmatpush.msra.mxu0 %v676
    %1664 = vmatmul.f32.gmra.mxu0 %v667
    %v1665 = vpop.f32.mrf.mxu0
    %v1666 = vadd.f32 %v1238, %v1665
    %1667 = vdwg.mxu0
    %1668 = vmatpush.msra.mxu0 %v893
    %1669 = vmatpush.msra.mxu0 %v886
    %1670 = vmatpush.msra.mxu0 %v879
    %1671 = vmatpush.msra.mxu0 %v872
    %1672 = vmatpush.msra.mxu0 %v865
    %1673 = vmatpush.msra.mxu0 %v858
    %1674 = vmatpush.msra.mxu0 %v851
    %1675 = vmatpush.msra.mxu0 %v844
    %1676 = vmatpush.msra.mxu0 %v837
    %1677 = vmatpush.msra.mxu0 %v830
    %1678 = vmatpush.msra.mxu0 %v823
    %1679 = vmatpush.msra.mxu0 %v816
    %1680 = vmatpush.msra.mxu0 %v809
    %1681 = vmatpush.msra.mxu0 %v802
    %1682 = vmatpush.msra.mxu0 %v795
    %1683 = vmatpush.msra.mxu0 %v788
    %1684 = vmatmul.f32.gmra.mxu0 %v668
    %v1685 = vpop.f32.mrf.mxu0
    %v1686 = vadd.f32 %v1666, %v1685
    %1687 = vdwg.mxu0
    %1688 = vmatpush.msra.mxu0 %v1005
    %1689 = vmatpush.msra.mxu0 %v998
    %1690 = vmatpush.msra.mxu0 %v991
    %1691 = vmatpush.msra.mxu0 %v984
    %1692 = vmatpush.msra.mxu0 %v977
    %1693 = vmatpush.msra.mxu0 %v970
    %1694 = vmatpush.msra.mxu0 %v963
    %1695 = vmatpush.msra.mxu0 %v956
    %1696 = vmatpush.msra.mxu0 %v949
    %1697 = vmatpush.msra.mxu0 %v942
    %1698 = vmatpush.msra.mxu0 %v935
    %1699 = vmatpush.msra.mxu0 %v928
    %1700 = vmatpush.msra.mxu0 %v921
    %1701 = vmatpush.msra.mxu0 %v914
    %1702 = vmatpush.msra.mxu0 %v907
    %1703 = vmatpush.msra.mxu0 %v900
    %1704 = vmatmul.f32.gmra.mxu0 %v669
    %v1705 = vpop.f32.mrf.mxu0
    %v1706 = vadd.f32 %v1686, %v1705
    %1707 = vdwg.mxu0
    %1708 = vmatpush.msra.mxu0 %v1117
    %1709 = vmatpush.msra.mxu0 %v1110
    %1710 = vmatpush.msra.mxu0 %v1103
    %1711 = vmatpush.msra.mxu0 %v1096
    %1712 = vmatpush.msra.mxu0 %v1089
    %1713 = vmatpush.msra.mxu0 %v1082
    %1714 = vmatpush.msra.mxu0 %v1075
    %1715 = vmatpush.msra.mxu0 %v1068
    %1716 = vmatpush.msra.mxu0 %v1061
    %1717 = vmatpush.msra.mxu0 %v1054
    %1718 = vmatpush.msra.mxu0 %v1047
    %1719 = vmatpush.msra.mxu0 %v1040
    %1720 = vmatpush.msra.mxu0 %v1033
    %1721 = vmatpush.msra.mxu0 %v1026
    %1722 = vmatpush.msra.mxu0 %v1019
    %1723 = vmatpush.msra.mxu0 %v1012
    %1724 = vmatmul.f32.gmra.mxu0 %v670
    %v1725 = vpop.f32.mrf.mxu0
    %v1726 = vadd.f32 %v1706, %v1725
    %1727 = vdwg.mxu0
    %1728 = vmatpush.msra.mxu0 %v1229
    %1729 = vmatpush.msra.mxu0 %v1222
    %1730 = vmatpush.msra.mxu0 %v1215
    %1731 = vmatpush.msra.mxu0 %v1208
    %1732 = vmatpush.msra.mxu0 %v1201
    %1733 = vmatpush.msra.mxu0 %v1194
    %1734 = vmatpush.msra.mxu0 %v1187
    %1735 = vmatpush.msra.mxu0 %v1180
    %1736 = vmatpush.msra.mxu0 %v1173
    %1737 = vmatpush.msra.mxu0 %v1166
    %1738 = vmatpush.msra.mxu0 %v1159
    %1739 = vmatpush.msra.mxu0 %v1152
    %1740 = vmatpush.msra.mxu0 %v1145
    %1741 = vmatpush.msra.mxu0 %v1138
    %1742 = vmatpush.msra.mxu0 %v1131
    %1743 = vmatpush.msra.mxu0 %v1124
    %1744 = vmatmul.f32.gmra.mxu0 %v671
    %v1745 = vpop.f32.mrf.mxu0
    %v1746 = vadd.f32 %v1726, %v1745
    %1747 = vdwg.mxu0
    %1748 = vmatpush.msra.mxu0 %v782
    %1749 = vmatpush.msra.mxu0 %v775
    %1750 = vmatpush.msra.mxu0 %v768
    %1751 = vmatpush.msra.mxu0 %v761
    %1752 = vmatpush.msra.mxu0 %v754
    %1753 = vmatpush.msra.mxu0 %v747
    %1754 = vmatpush.msra.mxu0 %v740
    %1755 = vmatpush.msra.mxu0 %v733
    %1756 = vmatpush.msra.mxu0 %v726
    %1757 = vmatpush.msra.mxu0 %v719
    %1758 = vmatpush.msra.mxu0 %v712
    %1759 = vmatpush.msra.mxu0 %v705
    %1760 = vmatpush.msra.mxu0 %v698
    %1761 = vmatpush.msra.mxu0 %v691
    %1762 = vmatpush.msra.mxu0 %v684
    %1763 = vmatpush.msra.mxu0 %v677
    %1764 = vmatmul.f32.gmra.mxu0 %v667
    %v1765 = vpop.f32.mrf.mxu0
    %v1766 = vadd.f32 %v1239, %v1765
    %1767 = vdwg.mxu0
    %1768 = vmatpush.msra.mxu0 %v894
    %1769 = vmatpush.msra.mxu0 %v887
    %1770 = vmatpush.msra.mxu0 %v880
    %1771 = vmatpush.msra.mxu0 %v873
    %1772 = vmatpush.msra.mxu0 %v866
    %1773 = vmatpush.msra.mxu0 %v859
    %1774 = vmatpush.msra.mxu0 %v852
    %1775 = vmatpush.msra.mxu0 %v845
    %1776 = vmatpush.msra.mxu0 %v838
    %1777 = vmatpush.msra.mxu0 %v831
    %1778 = vmatpush.msra.mxu0 %v824
    %1779 = vmatpush.msra.mxu0 %v817
    %1780 = vmatpush.msra.mxu0 %v810
    %1781 = vmatpush.msra.mxu0 %v803
    %1782 = vmatpush.msra.mxu0 %v796
    %1783 = vmatpush.msra.mxu0 %v789
    %1784 = vmatmul.f32.gmra.mxu0 %v668
    %v1785 = vpop.f32.mrf.mxu0
    %v1786 = vadd.f32 %v1766, %v1785
    %1787 = vdwg.mxu0
    %1788 = vmatpush.msra.mxu0 %v1006
    %1789 = vmatpush.msra.mxu0 %v999
    %1790 = vmatpush.msra.mxu0 %v992
    %1791 = vmatpush.msra.mxu0 %v985
    %1792 = vmatpush.msra.mxu0 %v978
    %1793 = vmatpush.msra.mxu0 %v971
    %1794 = vmatpush.msra.mxu0 %v964
    %1795 = vmatpush.msra.mxu0 %v957
    %1796 = vmatpush.msra.mxu0 %v950
    %1797 = vmatpush.msra.mxu0 %v943
    %1798 = vmatpush.msra.mxu0 %v936
    %1799 = vmatpush.msra.mxu0 %v929
    %1800 = vmatpush.msra.mxu0 %v922
    %1801 = vmatpush.msra.mxu0 %v915
    %1802 = vmatpush.msra.mxu0 %v908
    %1803 = vmatpush.msra.mxu0 %v901
    %1804 = vmatmul.f32.gmra.mxu0 %v669
    %v1805 = vpop.f32.mrf.mxu0
    %v1806 = vadd.f32 %v1786, %v1805
    %1807 = vdwg.mxu0
    %1808 = vmatpush.msra.mxu0 %v1118
    %1809 = vmatpush.msra.mxu0 %v1111
    %1810 = vmatpush.msra.mxu0 %v1104
    %1811 = vmatpush.msra.mxu0 %v1097
    %1812 = vmatpush.msra.mxu0 %v1090
    %1813 = vmatpush.msra.mxu0 %v1083
    %1814 = vmatpush.msra.mxu0 %v1076
    %1815 = vmatpush.msra.mxu0 %v1069
    %1816 = vmatpush.msra.mxu0 %v1062
    %1817 = vmatpush.msra.mxu0 %v1055
    %1818 = vmatpush.msra.mxu0 %v1048
    %1819 = vmatpush.msra.mxu0 %v1041
    %1820 = vmatpush.msra.mxu0 %v1034
    %1821 = vmatpush.msra.mxu0 %v1027
    %1822 = vmatpush.msra.mxu0 %v1020
    %1823 = vmatpush.msra.mxu0 %v1013
    %1824 = vmatmul.f32.gmra.mxu0 %v670
    %v1825 = vpop.f32.mrf.mxu0
    %v1826 = vadd.f32 %v1806, %v1825
    %1827 = vdwg.mxu0
    %1828 = vmatpush.msra.mxu0 %v1230
    %1829 = vmatpush.msra.mxu0 %v1223
    %1830 = vmatpush.msra.mxu0 %v1216
    %1831 = vmatpush.msra.mxu0 %v1209
    %1832 = vmatpush.msra.mxu0 %v1202
    %1833 = vmatpush.msra.mxu0 %v1195
    %1834 = vmatpush.msra.mxu0 %v1188
    %1835 = vmatpush.msra.mxu0 %v1181
    %1836 = vmatpush.msra.mxu0 %v1174
    %1837 = vmatpush.msra.mxu0 %v1167
    %1838 = vmatpush.msra.mxu0 %v1160
    %1839 = vmatpush.msra.mxu0 %v1153
    %1840 = vmatpush.msra.mxu0 %v1146
    %1841 = vmatpush.msra.mxu0 %v1139
    %1842 = vmatpush.msra.mxu0 %v1132
    %1843 = vmatpush.msra.mxu0 %v1125
    %1844 = vmatmul.f32.gmra.mxu0 %v671
    %v1845 = vpop.f32.mrf.mxu0
    %v1846 = vadd.f32 %v1826, %v1845
    %1847 = vdwg.mxu0
    %1848 = vmatpush.msra.mxu0 %v783
    %1849 = vmatpush.msra.mxu0 %v776
    %1850 = vmatpush.msra.mxu0 %v769
    %1851 = vmatpush.msra.mxu0 %v762
    %1852 = vmatpush.msra.mxu0 %v755
    %1853 = vmatpush.msra.mxu0 %v748
    %1854 = vmatpush.msra.mxu0 %v741
    %1855 = vmatpush.msra.mxu0 %v734
    %1856 = vmatpush.msra.mxu0 %v727
    %1857 = vmatpush.msra.mxu0 %v720
    %1858 = vmatpush.msra.mxu0 %v713
    %1859 = vmatpush.msra.mxu0 %v706
    %1860 = vmatpush.msra.mxu0 %v699
    %1861 = vmatpush.msra.mxu0 %v692
    %1862 = vmatpush.msra.mxu0 %v685
    %1863 = vmatpush.msra.mxu0 %v678
    %1864 = vmatmul.f32.gmra.mxu0 %v667
    %v1865 = vpop.f32.mrf.mxu0
    %v1866 = vadd.f32 %v1240, %v1865
    %1867 = vdwg.mxu0
    %1868 = vmatpush.msra.mxu0 %v895
    %1869 = vmatpush.msra.mxu0 %v888
    %1870 = vmatpush.msra.mxu0 %v881
    %1871 = vmatpush.msra.mxu0 %v874
    %1872 = vmatpush.msra.mxu0 %v867
    %1873 = vmatpush.msra.mxu0 %v860
    %1874 = vmatpush.msra.mxu0 %v853
    %1875 = vmatpush.msra.mxu0 %v846
    %1876 = vmatpush.msra.mxu0 %v839
    %1877 = vmatpush.msra.mxu0 %v832
    %1878 = vmatpush.msra.mxu0 %v825
    %1879 = vmatpush.msra.mxu0 %v818
    %1880 = vmatpush.msra.mxu0 %v811
    %1881 = vmatpush.msra.mxu0 %v804
    %1882 = vmatpush.msra.mxu0 %v797
    %1883 = vmatpush.msra.mxu0 %v790
    %1884 = vmatmul.f32.gmra.mxu0 %v668
    %v1885 = vpop.f32.mrf.mxu0
    %v1886 = vadd.f32 %v1866, %v1885
    %1887 = vdwg.mxu0
    %1888 = vmatpush.msra.mxu0 %v1007
    %1889 = vmatpush.msra.mxu0 %v1000
    %1890 = vmatpush.msra.mxu0 %v993
    %1891 = vmatpush.msra.mxu0 %v986
    %1892 = vmatpush.msra.mxu0 %v979
    %1893 = vmatpush.msra.mxu0 %v972
    %1894 = vmatpush.msra.mxu0 %v965
    %1895 = vmatpush.msra.mxu0 %v958
    %1896 = vmatpush.msra.mxu0 %v951
    %1897 = vmatpush.msra.mxu0 %v944
    %1898 = vmatpush.msra.mxu0 %v937
    %1899 = vmatpush.msra.mxu0 %v930
    %1900 = vmatpush.msra.mxu0 %v923
    %1901 = vmatpush.msra.mxu0 %v916
    %1902 = vmatpush.msra.mxu0 %v909
    %1903 = vmatpush.msra.mxu0 %v902
    %1904 = vmatmul.f32.gmra.mxu0 %v669
    %v1905 = vpop.f32.mrf.mxu0
    %v1906 = vadd.f32 %v1886, %v1905
    %1907 = vdwg.mxu0
    %1908 = vmatpush.msra.mxu0 %v1119
    %1909 = vmatpush.msra.mxu0 %v1112
    %1910 = vmatpush.msra.mxu0 %v1105
    %1911 = vmatpush.msra.mxu0 %v1098
    %1912 = vmatpush.msra.mxu0 %v1091
    %1913 = vmatpush.msra.mxu0 %v1084
    %1914 = vmatpush.msra.mxu0 %v1077
    %1915 = vmatpush.msra.mxu0 %v1070
    %1916 = vmatpush.msra.mxu0 %v1063
    %1917 = vmatpush.msra.mxu0 %v1056
    %1918 = vmatpush.msra.mxu0 %v1049
    %1919 = vmatpush.msra.mxu0 %v1042
    %1920 = vmatpush.msra.mxu0 %v1035
    %1921 = vmatpush.msra.mxu0 %v1028
    %1922 = vmatpush.msra.mxu0 %v1021
    %1923 = vmatpush.msra.mxu0 %v1014
    %1924 = vmatmul.f32.gmra.mxu0 %v670
    %v1925 = vpop.f32.mrf.mxu0
    %v1926 = vadd.f32 %v1906, %v1925
    %1927 = vdwg.mxu0
    %1928 = vmatpush.msra.mxu0 %v1231
    %1929 = vmatpush.msra.mxu0 %v1224
    %1930 = vmatpush.msra.mxu0 %v1217
    %1931 = vmatpush.msra.mxu0 %v1210
    %1932 = vmatpush.msra.mxu0 %v1203
    %1933 = vmatpush.msra.mxu0 %v1196
    %1934 = vmatpush.msra.mxu0 %v1189
    %1935 = vmatpush.msra.mxu0 %v1182
    %1936 = vmatpush.msra.mxu0 %v1175
    %1937 = vmatpush.msra.mxu0 %v1168
    %1938 = vmatpush.msra.mxu0 %v1161
    %1939 = vmatpush.msra.mxu0 %v1154
    %1940 = vmatpush.msra.mxu0 %v1147
    %1941 = vmatpush.msra.mxu0 %v1140
    %1942 = vmatpush.msra.mxu0 %v1133
    %1943 = vmatpush.msra.mxu0 %v1126
    %1944 = vmatmul.f32.gmra.mxu0 %v671
    %v1945 = vpop.f32.mrf.mxu0
    %v1946 = vadd.f32 %v1926, %v1945
    %1947 = vdwg.mxu0
    %v1948 = vmax.f32 %v1346, 0.0
    %v1949 = vmax.f32 %v1446, 0.0
    %v1950 = vmax.f32 %v1546, 0.0
    %v1951 = vmax.f32 %v1646, 0.0
    %v1952 = vmax.f32 %v1746, 0.0
    %v1953 = vmax.f32 %v1846, 0.0
    %v1954 = vmax.f32 %v1946, 0.0
    %1955 = vst [vmem:[#allocation2] sm:$0xff] %v1948
    %1956 = vst [vmem:[#allocation2 + $0x8] sm:$0xff] %v1949
    %1957 = vst [vmem:[#allocation2 + $0x10] sm:$0xff] %v1950
    %1958 = vst [vmem:[#allocation2 + $0x18] sm:$0xff] %v1951
    %1959 = vst [vmem:[#allocation2 + $0x20] sm:$0xff] %v1952
    %1960 = vst [vmem:[#allocation2 + $0x28] sm:$0xff] %v1953
    %vm1961 = vcmask 130048
    %1962 = vst.msk [vmem:[#allocation2 + $0x30] sm:$0xff] %vm1961, %v1954
    // Predicated region
    $region30: #{tpu_custom_call.1} parent=1 // pred_check
      _
    $region31: #{tpu_custom_call.1} parent=1 // pred_check_branch
      %1964 = sbr.rel (0) target = $region33
    $region32: #{tpu_custom_call.1} parent=1 // pred_region
      %1966 = vsyncadd [#allocation3], 0
      %s1968 = sshll.u32 [#allocation2], 4
      %s1969 = int_to_ptr.vmem [resolvable:$true] %s1968
      %s1970 = sshll.u32 %s7, 4
      %s1971 = int_to_ptr.hbm [resolvable:$true] %s1970
      %1973 = dma.vmem_to_hbm [thread:$0]  %s1969, 896, %s1971, [#allocation3]
    $region33: #{tpu_custom_call.1} parent=1 // pred_fallthru
      _
    // Predicated region
    $region34: #{tpu_custom_call.1} parent=1 // pred_check
      _
    $region35: #{tpu_custom_call.1} parent=1 // pred_check_branch
      %1975 = sbr.rel (0) target = $region37
    $region36: #{tpu_custom_call.1} parent=1 // pred_region
      %1977 = dma.done [#allocation3], 896
    $region37: #{tpu_custom_call.1} parent=1 // pred_fallthru
      _
    %1978 = vsyncpa [#allocation3], 1

</llo_original>
